<compile_context>
chip_gen: v7x
topology: tpu7x:2x2x1
jax: 0.10.0
libtpu: 0.0.40
codegen_flags: <defaults>
</compile_context>

<pallas_src>
from functools import partial

import jax
import jax.numpy as jnp
from jax.experimental import pallas as pl
from jax.experimental.pallas import tpu as pltpu


_HALO_ROWS = 32  # uint8 sublane tile; only 3 halo rows are actually needed by the stencil


def _diag_noise_kernel(main_ref, halo_ref, out_ref):
    # main_ref: (C, TR, Wp) uint8 -- padded rows [i*TR, (i+1)*TR)
    # halo_ref: (C, 32, Wp) uint8 -- padded rows [(i+1)*TR, (i+1)*TR + 32)
    # out_ref : (TR, W)     uint8
    C, TR, Wp = main_ref.shape
    W = out_ref.shape[1]

    result = None
    for c in range(C):  # C is small and static -> unrolled
        xm = main_ref[c].astype(jnp.int32)            # (TR, Wp)
        xh = halo_ref[c].astype(jnp.int32)            # (32, Wp)
        slab = jnp.concatenate([xm, xh], axis=0)      # (TR + 32, Wp), tile-aligned concat

        # Sum of 4 consecutive padded rows (padded rows y..y+3 feed output row y).
        rowsum = (slab[0:TR] + slab[1:TR + 1]
                  + slab[2:TR + 2] + slab[3:TR + 3])  # (TR, Wp)

        # Output column x uses padded columns x, x+1, x+2 (original columns x-2, x-1, x).
        r_m2 = rowsum[:, 0:W]        # original column x-2
        r_m1 = rowsum[:, 1:W + 1]    # original column x-1
        r_0 = rowsum[:, 2:W + 2]     # original column x

        pos1 = (r_m1 - r_m2) > 0     # 'Diagonal TL-BR' result > 0
        pos2 = (r_m1 - r_0) > 0      # 'Diagonal BL-TR' result > 0

        # uint8 wrap-add of the two 0/255 masks: exactly one positive -> 255, both -> 254.
        val = jnp.where(pos1 != pos2, 255, jnp.where(pos1 & pos2, 254, 0))
        result = val if result is None else jnp.maximum(result, val)

    out_ref[...] = result.astype(jnp.uint8)


@partial(jax.jit, static_argnames=("tile_rows",))
def diagonal_noise(image_hwc_u8, *, tile_rows=128):
    """(H, W, C) uint8 BGR image -> (H, W) uint8 diagonal-noise mask."""
    H, W, C = image_hwc_u8.shape
    assert tile_rows % _HALO_ROWS == 0

    # HWC -> CHW and reflect-101 pad, both in uint8.
    # Stencil footprint: rows -2..+1 (pad top 2 / bottom 1), cols -2..0 (pad left 2).
    chw = jnp.transpose(image_hwc_u8, (2, 0, 1))                      # (C, H, W)   u8
    padded = jnp.pad(chw, ((0, 0), (2, 1), (2, 0)), mode="reflect")   # (C, H+3, W+2) u8
    Wp = W + 2

    num_tiles = int(pl.cdiv(H, tile_rows))
    h_out = num_tiles * tile_rows
    rows_total = h_out + _HALO_ROWS
    extra = rows_total - (H + 3)
    if extra > 0:
        # Filler rows: only feed output rows >= H, which are sliced away below.
        padded = jnp.pad(padded, ((0, 0), (0, extra), (0, 0)))

    halo_step = tile_rows // _HALO_ROWS

    out = pl.pallas_call(
        _diag_noise_kernel,
        out_shape=jax.ShapeDtypeStruct((h_out, W), jnp.uint8),
        grid=(num_tiles,),
        in_specs=[
            pl.BlockSpec((C, tile_rows, Wp), lambda i: (0, i, 0)),
            pl.BlockSpec((C, _HALO_ROWS, Wp), lambda i: (0, (i + 1) * halo_step, 0)),
        ],
        out_specs=pl.BlockSpec((tile_rows, W), lambda i: (i, 0)),
        compiler_params=pltpu.CompilerParams(dimension_semantics=("parallel",)),
        cost_estimate=pl.CostEstimate(
            flops=12 * h_out * W * C,
            transcendentals=0,
            bytes_accessed=C * rows_total * Wp + h_out * W,
        ),
    )(padded, padded)

    return out[:H] if h_out != H else out


def _reference(image_hwc_u8):
    """Literal (unfactorized) JAX re-implementation of the module's forward pass."""
    img = image_hwc_u8.astype(jnp.int32)
    H, W, C = img.shape
    k1 = ((-1, 1, 0, 0),) * 4      # 'Diagonal TL-BR (medium)'
    k2 = ((0, 1, -1, 0),) * 4      # 'Diagonal BL-TR (medium)'
    # cv2.filter2D: correlation, anchor (2,2), BORDER_REFLECT_101 (== jnp 'reflect').
    p = jnp.pad(img, ((2, 1), (2, 1), (0, 0)), mode="reflect")

    def corr(kern):
        acc = jnp.zeros((H, W, C), jnp.int32)
        for ky in range(4):
            for kx in range(4):
                w = kern[ky][kx]
                if w:
                    acc = acc + w * p[ky:ky + H, kx:kx + W, :]
        return acc

    b1 = jnp.where(corr(k1) > 0, 255, 0).astype(jnp.uint8)
    b2 = jnp.where(corr(k2) > 0, 255, 0).astype(jnp.uint8)
    return jnp.max(b1 + b2, axis=-1)   # uint8 wrap-add, then channel max


if __name__ == "__main__":
    key = jax.random.PRNGKey(0)
    key_a, key_b = jax.random.split(key)

    # Small image (single row tile).
    img_a = jax.random.randint(key_a, (16, 16, 3), 0, 256, dtype=jnp.int32).astype(jnp.uint8)
    # Taller image (two row tiles -> exercises the cross-tile halo), lane-dense width.
    img_b = jax.random.randint(key_b, (200, 256, 3), 0, 256, dtype=jnp.int32).astype(jnp.uint8)

    ok = True
    for img in (img_a, img_b):
        mask = diagonal_noise(img)
        jax.block_until_ready(mask)
        ref = _reference(img)
        H, W, _ = img.shape
        ok &= (mask.shape == (H, W)) and (mask.dtype == jnp.uint8)
        ok &= bool(jnp.all(mask == ref))
        vals = jnp.unique(mask.astype(jnp.int32))
        ok &= bool(jnp.all((vals == 0) | (vals == 254) | (vals == 255)))

    assert ok
    print("KERNEL_OK")
</pallas_src>

<mosaic_0001>
module attributes {stable_mosaic.version = 11 : i64} {
  func.func @_diag_noise_kernel(%arg0: i32, %arg1: memref<3x128x18xi8, #tpu.memory_space<vmem>>, %arg2: memref<3x32x18xi8, #tpu.memory_space<vmem>>, %arg3: memref<128x16xi8, #tpu.memory_space<vmem>>) attributes {dimension_semantics = [#tpu.dimension_semantics<parallel>], iteration_bounds = array<i64: 1>, scalar_prefetch = 0 : i64, scratch_operands = 0 : i64, tpu.core_type = #tpu.core_type<tc>, window_params = [{transform_indices = @transform_0, window_bounds = array<i64: 3, 128, 18>}, {transform_indices = @transform_1, window_bounds = array<i64: 3, 32, 18>}, {transform_indices = @transform_2, window_bounds = array<i64: 128, 16>}]} {
    %c0 = arith.constant 0 : index
    %c0_0 = arith.constant 0 : index
    %c0_1 = arith.constant 0 : index
    %0 = vector.load %arg1[%c0, %c0_0, %c0_1] : memref<3x128x18xi8, #tpu.memory_space<vmem>>, vector<1x128x18xi8>
    %1 = vector.shape_cast %0 : vector<1x128x18xi8> to vector<128x18xi8>
    %2 = arith.extui %1 : vector<128x18xi8> to vector<128x18xi32>
    %c0_2 = arith.constant 0 : index
    %c0_3 = arith.constant 0 : index
    %c0_4 = arith.constant 0 : index
    %3 = vector.load %arg2[%c0_2, %c0_3, %c0_4] : memref<3x32x18xi8, #tpu.memory_space<vmem>>, vector<1x32x18xi8>
    %4 = vector.shape_cast %3 : vector<1x32x18xi8> to vector<32x18xi8>
    %5 = arith.extui %4 : vector<32x18xi8> to vector<32x18xi32>
    %6 = tpu.concatenate %2, %5 in 0 : vector<128x18xi32>, vector<32x18xi32> -> vector<160x18xi32>
    %7 = vector.extract_strided_slice %6 {offsets = [0, 0], sizes = [128, 18], strides = [1, 1]} : vector<160x18xi32> to vector<128x18xi32>
    %8 = vector.extract_strided_slice %6 {offsets = [1, 0], sizes = [128, 18], strides = [1, 1]} : vector<160x18xi32> to vector<128x18xi32>
    %9 = arith.addi %7, %8 : vector<128x18xi32>
    %10 = vector.extract_strided_slice %6 {offsets = [2, 0], sizes = [128, 18], strides = [1, 1]} : vector<160x18xi32> to vector<128x18xi32>
    %11 = arith.addi %9, %10 : vector<128x18xi32>
    %12 = vector.extract_strided_slice %6 {offsets = [3, 0], sizes = [128, 18], strides = [1, 1]} : vector<160x18xi32> to vector<128x18xi32>
    %13 = arith.addi %11, %12 : vector<128x18xi32>
    %14 = vector.extract_strided_slice %13 {offsets = [0, 0], sizes = [128, 16], strides = [1, 1]} : vector<128x18xi32> to vector<128x16xi32>
    %15 = vector.extract_strided_slice %13 {offsets = [0, 1], sizes = [128, 16], strides = [1, 1]} : vector<128x18xi32> to vector<128x16xi32>
    %16 = vector.extract_strided_slice %13 {offsets = [0, 2], sizes = [128, 16], strides = [1, 1]} : vector<128x18xi32> to vector<128x16xi32>
    %17 = arith.subi %15, %14 : vector<128x16xi32>
    %c0_i32 = arith.constant 0 : i32
    %18 = vector.broadcast %c0_i32 : i32 to vector<128x16xi32>
    %19 = arith.cmpi sgt, %17, %18 : vector<128x16xi32>
    %20 = arith.subi %15, %16 : vector<128x16xi32>
    %c0_i32_5 = arith.constant 0 : i32
    %21 = vector.broadcast %c0_i32_5 : i32 to vector<128x16xi32>
    %22 = arith.cmpi sgt, %20, %21 : vector<128x16xi32>
    %23 = arith.xori %19, %22 : vector<128x16xi1>
    %24 = arith.andi %19, %22 : vector<128x16xi1>
    %c254_i32 = arith.constant 254 : i32
    %c0_i32_6 = arith.constant 0 : i32
    %25 = vector.broadcast %c254_i32 : i32 to vector<128x16xi32>
    %26 = vector.broadcast %c0_i32_6 : i32 to vector<128x16xi32>
    %27 = arith.select %24, %25, %26 : vector<128x16xi1>, vector<128x16xi32>
    %c255_i32 = arith.constant 255 : i32
    %28 = vector.broadcast %c255_i32 : i32 to vector<128x16xi32>
    %29 = arith.select %23, %28, %27 : vector<128x16xi1>, vector<128x16xi32>
    %c1 = arith.constant 1 : index
    %c0_7 = arith.constant 0 : index
    %c0_8 = arith.constant 0 : index
    %30 = vector.load %arg1[%c1, %c0_7, %c0_8] : memref<3x128x18xi8, #tpu.memory_space<vmem>>, vector<1x128x18xi8>
    %31 = vector.shape_cast %30 : vector<1x128x18xi8> to vector<128x18xi8>
    %32 = arith.extui %31 : vector<128x18xi8> to vector<128x18xi32>
    %c1_9 = arith.constant 1 : index
    %c0_10 = arith.constant 0 : index
    %c0_11 = arith.constant 0 : index
    %33 = vector.load %arg2[%c1_9, %c0_10, %c0_11] : memref<3x32x18xi8, #tpu.memory_space<vmem>>, vector<1x32x18xi8>
    %34 = vector.shape_cast %33 : vector<1x32x18xi8> to vector<32x18xi8>
    %35 = arith.extui %34 : vector<32x18xi8> to vector<32x18xi32>
    %36 = tpu.concatenate %32, %35 in 0 : vector<128x18xi32>, vector<32x18xi32> -> vector<160x18xi32>
    %37 = vector.extract_strided_slice %36 {offsets = [0, 0], sizes = [128, 18], strides = [1, 1]} : vector<160x18xi32> to vector<128x18xi32>
    %38 = vector.extract_strided_slice %36 {offsets = [1, 0], sizes = [128, 18], strides = [1, 1]} : vector<160x18xi32> to vector<128x18xi32>
    %39 = arith.addi %37, %38 : vector<128x18xi32>
    %40 = vector.extract_strided_slice %36 {offsets = [2, 0], sizes = [128, 18], strides = [1, 1]} : vector<160x18xi32> to vector<128x18xi32>
    %41 = arith.addi %39, %40 : vector<128x18xi32>
    %42 = vector.extract_strided_slice %36 {offsets = [3, 0], sizes = [128, 18], strides = [1, 1]} : vector<160x18xi32> to vector<128x18xi32>
    %43 = arith.addi %41, %42 : vector<128x18xi32>
    %44 = vector.extract_strided_slice %43 {offsets = [0, 0], sizes = [128, 16], strides = [1, 1]} : vector<128x18xi32> to vector<128x16xi32>
    %45 = vector.extract_strided_slice %43 {offsets = [0, 1], sizes = [128, 16], strides = [1, 1]} : vector<128x18xi32> to vector<128x16xi32>
    %46 = vector.extract_strided_slice %43 {offsets = [0, 2], sizes = [128, 16], strides = [1, 1]} : vector<128x18xi32> to vector<128x16xi32>
    %47 = arith.subi %45, %44 : vector<128x16xi32>
    %c0_i32_12 = arith.constant 0 : i32
    %48 = vector.broadcast %c0_i32_12 : i32 to vector<128x16xi32>
    %49 = arith.cmpi sgt, %47, %48 : vector<128x16xi32>
    %50 = arith.subi %45, %46 : vector<128x16xi32>
    %c0_i32_13 = arith.constant 0 : i32
    %51 = vector.broadcast %c0_i32_13 : i32 to vector<128x16xi32>
    %52 = arith.cmpi sgt, %50, %51 : vector<128x16xi32>
    %53 = arith.xori %49, %52 : vector<128x16xi1>
    %54 = arith.andi %49, %52 : vector<128x16xi1>
    %c254_i32_14 = arith.constant 254 : i32
    %c0_i32_15 = arith.constant 0 : i32
    %55 = vector.broadcast %c254_i32_14 : i32 to vector<128x16xi32>
    %56 = vector.broadcast %c0_i32_15 : i32 to vector<128x16xi32>
    %57 = arith.select %54, %55, %56 : vector<128x16xi1>, vector<128x16xi32>
    %c255_i32_16 = arith.constant 255 : i32
    %58 = vector.broadcast %c255_i32_16 : i32 to vector<128x16xi32>
    %59 = arith.select %53, %58, %57 : vector<128x16xi1>, vector<128x16xi32>
    %60 = arith.maxsi %29, %59 : vector<128x16xi32>
    %c2 = arith.constant 2 : index
    %c0_17 = arith.constant 0 : index
    %c0_18 = arith.constant 0 : index
    %61 = vector.load %arg1[%c2, %c0_17, %c0_18] : memref<3x128x18xi8, #tpu.memory_space<vmem>>, vector<1x128x18xi8>
    %62 = vector.shape_cast %61 : vector<1x128x18xi8> to vector<128x18xi8>
    %63 = arith.extui %62 : vector<128x18xi8> to vector<128x18xi32>
    %c2_19 = arith.constant 2 : index
    %c0_20 = arith.constant 0 : index
    %c0_21 = arith.constant 0 : index
    %64 = vector.load %arg2[%c2_19, %c0_20, %c0_21] : memref<3x32x18xi8, #tpu.memory_space<vmem>>, vector<1x32x18xi8>
    %65 = vector.shape_cast %64 : vector<1x32x18xi8> to vector<32x18xi8>
    %66 = arith.extui %65 : vector<32x18xi8> to vector<32x18xi32>
    %67 = tpu.concatenate %63, %66 in 0 : vector<128x18xi32>, vector<32x18xi32> -> vector<160x18xi32>
    %68 = vector.extract_strided_slice %67 {offsets = [0, 0], sizes = [128, 18], strides = [1, 1]} : vector<160x18xi32> to vector<128x18xi32>
    %69 = vector.extract_strided_slice %67 {offsets = [1, 0], sizes = [128, 18], strides = [1, 1]} : vector<160x18xi32> to vector<128x18xi32>
    %70 = arith.addi %68, %69 : vector<128x18xi32>
    %71 = vector.extract_strided_slice %67 {offsets = [2, 0], sizes = [128, 18], strides = [1, 1]} : vector<160x18xi32> to vector<128x18xi32>
    %72 = arith.addi %70, %71 : vector<128x18xi32>
    %73 = vector.extract_strided_slice %67 {offsets = [3, 0], sizes = [128, 18], strides = [1, 1]} : vector<160x18xi32> to vector<128x18xi32>
    %74 = arith.addi %72, %73 : vector<128x18xi32>
    %75 = vector.extract_strided_slice %74 {offsets = [0, 0], sizes = [128, 16], strides = [1, 1]} : vector<128x18xi32> to vector<128x16xi32>
    %76 = vector.extract_strided_slice %74 {offsets = [0, 1], sizes = [128, 16], strides = [1, 1]} : vector<128x18xi32> to vector<128x16xi32>
    %77 = vector.extract_strided_slice %74 {offsets = [0, 2], sizes = [128, 16], strides = [1, 1]} : vector<128x18xi32> to vector<128x16xi32>
    %78 = arith.subi %76, %75 : vector<128x16xi32>
    %c0_i32_22 = arith.constant 0 : i32
    %79 = vector.broadcast %c0_i32_22 : i32 to vector<128x16xi32>
    %80 = arith.cmpi sgt, %78, %79 : vector<128x16xi32>
    %81 = arith.subi %76, %77 : vector<128x16xi32>
    %c0_i32_23 = arith.constant 0 : i32
    %82 = vector.broadcast %c0_i32_23 : i32 to vector<128x16xi32>
    %83 = arith.cmpi sgt, %81, %82 : vector<128x16xi32>
    %84 = arith.xori %80, %83 : vector<128x16xi1>
    %85 = arith.andi %80, %83 : vector<128x16xi1>
    %c254_i32_24 = arith.constant 254 : i32
    %c0_i32_25 = arith.constant 0 : i32
    %86 = vector.broadcast %c254_i32_24 : i32 to vector<128x16xi32>
    %87 = vector.broadcast %c0_i32_25 : i32 to vector<128x16xi32>
    %88 = arith.select %85, %86, %87 : vector<128x16xi1>, vector<128x16xi32>
    %c255_i32_26 = arith.constant 255 : i32
    %89 = vector.broadcast %c255_i32_26 : i32 to vector<128x16xi32>
    %90 = arith.select %84, %89, %88 : vector<128x16xi1>, vector<128x16xi32>
    %91 = arith.maxsi %60, %90 : vector<128x16xi32>
    %92 = arith.trunci %91 : vector<128x16xi32> to vector<128x16xi8>
    %c0_27 = arith.constant 0 : index
    %c0_28 = arith.constant 0 : index
    %93 = vector.load %arg3[%c0_27, %c0_28] : memref<128x16xi8, #tpu.memory_space<vmem>>, vector<128x16xi8>
    tpu.vector_store %arg3[%c0_27, %c0_28], %92 {strides = array<i32>} : memref<128x16xi8, #tpu.memory_space<vmem>>, vector<128x16xi8>,
    return
  }
  func.func @transform_0(%arg0: i32) -> (i32, i32, i32) {
    %c0_i32 = arith.constant 0 : i32
    %c0_i32_0 = arith.constant 0 : i32
    %c0_i32_1 = arith.constant 0 : i32
    return %c0_i32, %arg0, %c0_i32_0 : i32, i32, i32
  }
  func.func @transform_1(%arg0: i32) -> (i32, i32, i32) {
    %c1_i32 = arith.constant 1 : i32
    %0 = arith.addi %arg0, %c1_i32 : i32
    %c4_i32 = arith.constant 4 : i32
    %1 = arith.muli %0, %c4_i32 : i32
    %c0_i32 = arith.constant 0 : i32
    %c0_i32_0 = arith.constant 0 : i32
    %c0_i32_1 = arith.constant 0 : i32
    return %c0_i32, %1, %c0_i32_0 : i32, i32, i32
  }
  func.func @transform_2(%arg0: i32) -> (i32, i32) {
    %c0_i32 = arith.constant 0 : i32
    %c0_i32_0 = arith.constant 0 : i32
    return %arg0, %c0_i32 : i32, i32
  }
}

</mosaic_0001>

<llo_original>
// kernel: diagonal_noise.1
$region0: #{diagonal_noise.1}
  #allocation0 [shape = 'u32[]', space=smem, size = 0x4, offset = 0x4, fixed_abs, tag = 'smem constant byte address 0x4 - core index']
  #allocation1 [shape = 'u32[144,128]{1,0:T(1,128)}', space=vmem, size = 0x12000, scoped, tag = 'internal scratch']
  %s0 = inlined_call_operand.vmem [shape: u8[3,160,18], index: 0, kind: input, shape index: {}, may-alias: {0,1}]
  %s1 = inlined_call_operand.vmem [shape: u8[3,160,18], index: 1, kind: input, shape index: {}, may-alias: {0,1}]
  %s2 = inlined_call_operand.vmem [shape: u8[128,16], index: 2, kind: output, shape index: {}]
  %s3 = sld [smem:[#allocation0]]
  $region94: #{diagonal_noise.1} parent=0
    _
  %s5 = ssub.s32 1, %s3
  %s6 = scalar_select 0, %s5, %s3
  $region1: #{diagonal_noise.1} parent=0
    #allocation2 [shape = 'u8[49152]{0}', space=vmem, size = 0xc000, scoped, tag = 'input window, operand 0, single buffered']
    #allocation3 [shape = 'u8[12288]{0}', space=vmem, size = 0x3000, scoped, tag = 'input window, operand 1, single buffered']
    // Predicated region
    $region2: #{diagonal_noise.1} parent=1 // pred_check
      _
    $region3: #{diagonal_noise.1} parent=1 // pred_check_branch
      %8 = sbr.rel (0) target = $region5
    $region4: #{diagonal_noise.1} parent=1 // pred_region
      // Predicated region
      $region6: #{diagonal_noise.1} parent=4 // pred_check
        _
      $region7: #{diagonal_noise.1} parent=4 // pred_check_branch
        %10 = sbr.rel (0) target = $region9
      $region8: #{diagonal_noise.1} parent=4 // pred_region
        // Predicated region
        $region10: #{diagonal_noise.1} parent=8 // pred_check
          _
        $region11: #{diagonal_noise.1} parent=8 // pred_check_branch
          %12 = sbr.rel (0) target = $region13
        $region12: #{diagonal_noise.1} parent=8 // pred_region
          // Predicated region
          $region25: #{diagonal_noise.1} parent=12 // pred_check
            _
          $region26: #{diagonal_noise.1} parent=12 // pred_check_branch
            %49 = sbr.rel (0) target = $region28
          $region27: #{diagonal_noise.1} parent=12 // pred_region
            loop: start=0, step=1, limit=1
            $region29: #{diagonal_noise.1} parent=27 // loop_pre_header
              _
            $region30: #{diagonal_noise.1} parent=27 // loop_header
              %s51 = sphi 0, %s55
              %p52 = scmp.ge.s32.totalorder %s51, 1
              %s56 = sphi %s0, %s0
              %s57 = sphi [#allocation2], [#allocation2]
            $region31: #{diagonal_noise.1} parent=27 // loop_header_branch
              %54 = sbr.rel (%p52) target = $region35
            $region32: #{diagonal_noise.1} parent=27 // loop_body
              %v58 = vld [vmem:[%s56] sm:$0xff]
              %59 = vst [vmem:[%s57] sm:$0xff] %v58
              %v60 = vld [vmem:[%s56 + $0x8] sm:$0xff]
              %61 = vst [vmem:[%s57 + $0x8] sm:$0xff] %v60
              %v62 = vld [vmem:[%s56 + $0x10] sm:$0xff]
              %63 = vst [vmem:[%s57 + $0x10] sm:$0xff] %v62
              %v64 = vld [vmem:[%s56 + $0x18] sm:$0xff]
              %65 = vst [vmem:[%s57 + $0x18] sm:$0xff] %v64
              %v66 = vld [vmem:[%s56 + $0x28] sm:$0xff]
              %67 = vst [vmem:[%s57 + $0x20] sm:$0xff] %v66
              %v68 = vld [vmem:[%s56 + $0x30] sm:$0xff]
              %69 = vst [vmem:[%s57 + $0x28] sm:$0xff] %v68
              %v70 = vld [vmem:[%s56 + $0x38] sm:$0xff]
              %71 = vst [vmem:[%s57 + $0x30] sm:$0xff] %v70
              %v72 = vld [vmem:[%s56 + $0x40] sm:$0xff]
              %73 = vst [vmem:[%s57 + $0x38] sm:$0xff] %v72
              %v74 = vld [vmem:[%s56 + $0x50] sm:$0xff]
              %75 = vst [vmem:[%s57 + $0x40] sm:$0xff] %v74
              %v76 = vld [vmem:[%s56 + $0x58] sm:$0xff]
              %77 = vst [vmem:[%s57 + $0x48] sm:$0xff] %v76
              %v78 = vld [vmem:[%s56 + $0x60] sm:$0xff]
              %79 = vst [vmem:[%s57 + $0x50] sm:$0xff] %v78
              %v80 = vld [vmem:[%s56 + $0x68] sm:$0xff]
              %81 = vst [vmem:[%s57 + $0x58] sm:$0xff] %v80
            $region33: #{diagonal_noise.1} parent=27 // loop_footer
              %s55 = sadd.s32 1, %s51
            $region34: #{diagonal_noise.1} parent=27 // loop_footer_branch
              %50 = sbr.rel target = $region30
            $region35: #{diagonal_noise.1} parent=27 // loop_exit
              _
          $region28: #{diagonal_noise.1} parent=12 // pred_fallthru
            _
          // Predicated region
          $region36: #{diagonal_noise.1} parent=12 // pred_check
            _
          $region37: #{diagonal_noise.1} parent=12 // pred_check_branch
            %83 = sbr.rel target = $region39
          $region38: #{diagonal_noise.1} parent=12 // pred_region
            _
          $region39: #{diagonal_noise.1} parent=12 // pred_fallthru
            _
        $region13: #{diagonal_noise.1} parent=8 // pred_fallthru
          _
        // Predicated region
        $region14: #{diagonal_noise.1} parent=8 // pred_check
          _
        $region15: #{diagonal_noise.1} parent=8 // pred_check_branch
          %14 = sbr.rel target = $region17
        $region16: #{diagonal_noise.1} parent=8 // pred_region
          loop: start=0, step=1, limit=1
          $region18: #{diagonal_noise.1} parent=16 // loop_pre_header
            _
          $region19: #{diagonal_noise.1} parent=16 // loop_header
            %s17 = sphi 0, %s21
            %p18 = scmp.ge.s32.totalorder %s17, 1
            %s22 = sphi %s0, %s0
            %s23 = sphi [#allocation2], [#allocation2]
          $region20: #{diagonal_noise.1} parent=16 // loop_header_branch
            %20 = sbr.rel (%p18) target = $region24
          $region21: #{diagonal_noise.1} parent=16 // loop_body
            %v24 = vld [vmem:[%s22] sm:$0xff]
            %25 = vst [vmem:[%s23] sm:$0xff] %v24
            %v26 = vld [vmem:[%s22 + $0x8] sm:$0xff]
            %27 = vst [vmem:[%s23 + $0x8] sm:$0xff] %v26
            %v28 = vld [vmem:[%s22 + $0x10] sm:$0xff]
            %29 = vst [vmem:[%s23 + $0x10] sm:$0xff] %v28
            %v30 = vld [vmem:[%s22 + $0x18] sm:$0xff]
            %31 = vst [vmem:[%s23 + $0x18] sm:$0xff] %v30
            %v32 = vld [vmem:[%s22 + $0x28] sm:$0xff]
            %33 = vst [vmem:[%s23 + $0x20] sm:$0xff] %v32
            %v34 = vld [vmem:[%s22 + $0x30] sm:$0xff]
            %35 = vst [vmem:[%s23 + $0x28] sm:$0xff] %v34
            %v36 = vld [vmem:[%s22 + $0x38] sm:$0xff]
            %37 = vst [vmem:[%s23 + $0x30] sm:$0xff] %v36
            %v38 = vld [vmem:[%s22 + $0x40] sm:$0xff]
            %39 = vst [vmem:[%s23 + $0x38] sm:$0xff] %v38
            %v40 = vld [vmem:[%s22 + $0x50] sm:$0xff]
            %41 = vst [vmem:[%s23 + $0x40] sm:$0xff] %v40
            %v42 = vld [vmem:[%s22 + $0x58] sm:$0xff]
            %43 = vst [vmem:[%s23 + $0x48] sm:$0xff] %v42
            %v44 = vld [vmem:[%s22 + $0x60] sm:$0xff]
            %45 = vst [vmem:[%s23 + $0x50] sm:$0xff] %v44
            %v46 = vld [vmem:[%s22 + $0x68] sm:$0xff]
            %47 = vst [vmem:[%s23 + $0x58] sm:$0xff] %v46
          $region22: #{diagonal_noise.1} parent=16 // loop_footer
            %s21 = sadd.s32 1, %s17
          $region23: #{diagonal_noise.1} parent=16 // loop_footer_branch
            %16 = sbr.rel target = $region19
          $region24: #{diagonal_noise.1} parent=16 // loop_exit
            _
        $region17: #{diagonal_noise.1} parent=8 // pred_fallthru
          _
      $region9: #{diagonal_noise.1} parent=4 // pred_fallthru
        _
      %84 = vnop
    $region5: #{diagonal_noise.1} parent=1 // pred_fallthru
      _
    // Predicated region
    $region40: #{diagonal_noise.1} parent=1 // pred_check
      _
    $region41: #{diagonal_noise.1} parent=1 // pred_check_branch
      %86 = sbr.rel (0) target = $region43
    $region42: #{diagonal_noise.1} parent=1 // pred_region
      %s87 = sadd.s32 0, 1
      %s88 = smul.u32 %s87, 4
      %s89 = smul.addr %s88, 8
      %s90 = scalar_lea.vmem %s1, %s89
      // Predicated region
      $region44: #{diagonal_noise.1} parent=42 // pred_check
        _
      $region45: #{diagonal_noise.1} parent=42 // pred_check_branch
        %92 = sbr.rel (0) target = $region47
      $region46: #{diagonal_noise.1} parent=42 // pred_region
        // Predicated region
        $region48: #{diagonal_noise.1} parent=46 // pred_check
          _
        $region49: #{diagonal_noise.1} parent=46 // pred_check_branch
          %94 = sbr.rel (0) target = $region51
        $region50: #{diagonal_noise.1} parent=46 // pred_region
          // Predicated region
          $region63: #{diagonal_noise.1} parent=50 // pred_check
            _
          $region64: #{diagonal_noise.1} parent=50 // pred_check_branch
            %113 = sbr.rel (0) target = $region66
          $region65: #{diagonal_noise.1} parent=50 // pred_region
            loop: start=0, step=1, limit=1
            $region67: #{diagonal_noise.1} parent=65 // loop_pre_header
              _
            $region68: #{diagonal_noise.1} parent=65 // loop_header
              %s115 = sphi 0, %s119
              %p116 = scmp.ge.s32.totalorder %s115, 1
              %s120 = sphi %s90, %s90
              %s121 = sphi [#allocation3], [#allocation3]
            $region69: #{diagonal_noise.1} parent=65 // loop_header_branch
              %118 = sbr.rel (%p116) target = $region73
            $region70: #{diagonal_noise.1} parent=65 // loop_body
              %v122 = vld [vmem:[%s120] sm:$0xff]
              %123 = vst [vmem:[%s121] sm:$0xff] %v122
              %v124 = vld [vmem:[%s120 + $0x28] sm:$0xff]
              %125 = vst [vmem:[%s121 + $0x8] sm:$0xff] %v124
              %v126 = vld [vmem:[%s120 + $0x50] sm:$0xff]
              %127 = vst [vmem:[%s121 + $0x10] sm:$0xff] %v126
            $region71: #{diagonal_noise.1} parent=65 // loop_footer
              %s119 = sadd.s32 1, %s115
            $region72: #{diagonal_noise.1} parent=65 // loop_footer_branch
              %114 = sbr.rel target = $region68
            $region73: #{diagonal_noise.1} parent=65 // loop_exit
              _
          $region66: #{diagonal_noise.1} parent=50 // pred_fallthru
            _
          // Predicated region
          $region74: #{diagonal_noise.1} parent=50 // pred_check
            _
          $region75: #{diagonal_noise.1} parent=50 // pred_check_branch
            %129 = sbr.rel target = $region77
          $region76: #{diagonal_noise.1} parent=50 // pred_region
            _
          $region77: #{diagonal_noise.1} parent=50 // pred_fallthru
            _
        $region51: #{diagonal_noise.1} parent=46 // pred_fallthru
          _
        // Predicated region
        $region52: #{diagonal_noise.1} parent=46 // pred_check
          _
        $region53: #{diagonal_noise.1} parent=46 // pred_check_branch
          %96 = sbr.rel target = $region55
        $region54: #{diagonal_noise.1} parent=46 // pred_region
          loop: start=0, step=1, limit=1
          $region56: #{diagonal_noise.1} parent=54 // loop_pre_header
            _
          $region57: #{diagonal_noise.1} parent=54 // loop_header
            %s99 = sphi 0, %s103
            %p100 = scmp.ge.s32.totalorder %s99, 1
            %s104 = sphi %s90, %s90
            %s105 = sphi [#allocation3], [#allocation3]
          $region58: #{diagonal_noise.1} parent=54 // loop_header_branch
            %102 = sbr.rel (%p100) target = $region62
          $region59: #{diagonal_noise.1} parent=54 // loop_body
            %v106 = vld [vmem:[%s104] sm:$0xff]
            %107 = vst [vmem:[%s105] sm:$0xff] %v106
            %v108 = vld [vmem:[%s104 + $0x28] sm:$0xff]
            %109 = vst [vmem:[%s105 + $0x8] sm:$0xff] %v108
            %v110 = vld [vmem:[%s104 + $0x50] sm:$0xff]
            %111 = vst [vmem:[%s105 + $0x10] sm:$0xff] %v110
          $region60: #{diagonal_noise.1} parent=54 // loop_footer
            %s103 = sadd.s32 1, %s99
          $region61: #{diagonal_noise.1} parent=54 // loop_footer_branch
            %98 = sbr.rel target = $region57
          $region62: #{diagonal_noise.1} parent=54 // loop_exit
            _
        $region55: #{diagonal_noise.1} parent=46 // pred_fallthru
          _
      $region47: #{diagonal_noise.1} parent=42 // pred_fallthru
        _
      %130 = vnop
    $region43: #{diagonal_noise.1} parent=1 // pred_fallthru
      _
    // Predicated region
    $region78: #{diagonal_noise.1} parent=1 // pred_check
      _
    $region79: #{diagonal_noise.1} parent=1 // pred_check_branch
      %132 = sbr.rel (0) target = $region81
    $region80: #{diagonal_noise.1} parent=1 // pred_region
      _
    $region81: #{diagonal_noise.1} parent=1 // pred_fallthru
      _
    // Predicated region
    $region82: #{diagonal_noise.1} parent=1 // pred_check
      _
    $region83: #{diagonal_noise.1} parent=1 // pred_check_branch
      %134 = sbr.rel (0) target = $region85
    $region84: #{diagonal_noise.1} parent=1 // pred_region
      _
    $region85: #{diagonal_noise.1} parent=1 // pred_fallthru
      _
    %s135 = sadd.s32 0, 1
    %s136 = smul.u32 %s135, 4
    %v137 = vld [vmem:[#allocation2] sm:$0xff]
    %v138 = vld [vmem:[#allocation2 + $0x8] sm:$0xff]
    %v139 = vld [vmem:[#allocation2 + $0x10] sm:$0xff]
    %v140 = vld [vmem:[#allocation2 + $0x18] sm:$0xff]
    %v141 = vunpack.c.0.s8 %v137
    %v142 = vunpack.c.1.s8 %v137
    %v143 = vunpack.c.2.s8 %v137
    %v144 = vunpack.c.3.s8 %v137
    %v145 = vunpack.c.0.s8 %v138
    %v146 = vunpack.c.1.s8 %v138
    %v147 = vunpack.c.2.s8 %v138
    %v148 = vunpack.c.3.s8 %v138
    %v149 = vunpack.c.0.s8 %v139
    %v150 = vunpack.c.1.s8 %v139
    %v151 = vunpack.c.2.s8 %v139
    %v152 = vunpack.c.3.s8 %v139
    %v153 = vunpack.c.0.s8 %v140
    %v154 = vunpack.c.1.s8 %v140
    %v155 = vunpack.c.2.s8 %v140
    %v156 = vunpack.c.3.s8 %v140
    %v157 = vand.u32 %v141, 255
    %v158 = vand.u32 %v142, 255
    %v159 = vand.u32 %v143, 255
    %v160 = vand.u32 %v144, 255
    %v161 = vand.u32 %v145, 255
    %v162 = vand.u32 %v146, 255
    %v163 = vand.u32 %v147, 255
    %v164 = vand.u32 %v148, 255
    %v165 = vand.u32 %v149, 255
    %v166 = vand.u32 %v150, 255
    %v167 = vand.u32 %v151, 255
    %v168 = vand.u32 %v152, 255
    %v169 = vand.u32 %v153, 255
    %v170 = vand.u32 %v154, 255
    %v171 = vand.u32 %v155, 255
    %v172 = vand.u32 %v156, 255
    %v173 = vld [vmem:[#allocation3] sm:$0xff]
    %v174 = vunpack.c.0.s8 %v173
    %v175 = vand.u32 %v174, 255
    %vm176 = vcmask 1046528
    %v177 = vrot.slane %v157, 1
    %v178 = vrot.slane %v158, 1
    %v179 = vsel %vm176, %v177, %v178
    %v180 = vrot.slane %v159, 1
    %v181 = vsel %vm176, %v178, %v180
    %v182 = vrot.slane %v160, 1
    %v183 = vsel %vm176, %v180, %v182
    %v184 = vrot.slane %v161, 1
    %v185 = vsel %vm176, %v182, %v184
    %v186 = vrot.slane %v162, 1
    %v187 = vsel %vm176, %v184, %v186
    %v188 = vrot.slane %v163, 1
    %v189 = vsel %vm176, %v186, %v188
    %v190 = vrot.slane %v164, 1
    %v191 = vsel %vm176, %v188, %v190
    %v192 = vrot.slane %v165, 1
    %v193 = vsel %vm176, %v190, %v192
    %v194 = vrot.slane %v166, 1
    %v195 = vsel %vm176, %v192, %v194
    %v196 = vrot.slane %v167, 1
    %v197 = vsel %vm176, %v194, %v196
    %v198 = vrot.slane %v168, 1
    %v199 = vsel %vm176, %v196, %v198
    %v200 = vrot.slane %v169, 1
    %v201 = vsel %vm176, %v198, %v200
    %v202 = vrot.slane %v170, 1
    %v203 = vsel %vm176, %v200, %v202
    %v204 = vrot.slane %v171, 1
    %v205 = vsel %vm176, %v202, %v204
    %v206 = vrot.slane %v172, 1
    %v207 = vsel %vm176, %v204, %v206
    %v208 = vrot.slane %v175, 1
    %v209 = vsel %vm176, %v206, %v208
    %v210 = vadd.s32 %v157, %v179
    %v211 = vadd.s32 %v158, %v181
    %v212 = vadd.s32 %v159, %v183
    %v213 = vadd.s32 %v160, %v185
    %v214 = vadd.s32 %v161, %v187
    %v215 = vadd.s32 %v162, %v189
    %v216 = vadd.s32 %v163, %v191
    %v217 = vadd.s32 %v164, %v193
    %v218 = vadd.s32 %v165, %v195
    %v219 = vadd.s32 %v166, %v197
    %v220 = vadd.s32 %v167, %v199
    %v221 = vadd.s32 %v168, %v201
    %v222 = vadd.s32 %v169, %v203
    %v223 = vadd.s32 %v170, %v205
    %v224 = vadd.s32 %v171, %v207
    %v225 = vadd.s32 %v172, %v209
    %vm226 = vcmask 1045504
    %v227 = vrot.slane %v157, 2
    %v228 = vrot.slane %v158, 2
    %v229 = vsel %vm226, %v227, %v228
    %v230 = vrot.slane %v159, 2
    %v231 = vsel %vm226, %v228, %v230
    %v232 = vrot.slane %v160, 2
    %v233 = vsel %vm226, %v230, %v232
    %v234 = vrot.slane %v161, 2
    %v235 = vsel %vm226, %v232, %v234
    %v236 = vrot.slane %v162, 2
    %v237 = vsel %vm226, %v234, %v236
    %v238 = vrot.slane %v163, 2
    %v239 = vsel %vm226, %v236, %v238
    %v240 = vrot.slane %v164, 2
    %v241 = vsel %vm226, %v238, %v240
    %v242 = vrot.slane %v165, 2
    %v243 = vsel %vm226, %v240, %v242
    %v244 = vrot.slane %v166, 2
    %v245 = vsel %vm226, %v242, %v244
    %v246 = vrot.slane %v167, 2
    %v247 = vsel %vm226, %v244, %v246
    %v248 = vrot.slane %v168, 2
    %v249 = vsel %vm226, %v246, %v248
    %v250 = vrot.slane %v169, 2
    %v251 = vsel %vm226, %v248, %v250
    %v252 = vrot.slane %v170, 2
    %v253 = vsel %vm226, %v250, %v252
    %v254 = vrot.slane %v171, 2
    %v255 = vsel %vm226, %v252, %v254
    %v256 = vrot.slane %v172, 2
    %v257 = vsel %vm226, %v254, %v256
    %v258 = vrot.slane %v175, 2
    %v259 = vsel %vm226, %v256, %v258
    %v260 = vadd.s32 %v210, %v229
    %v261 = vadd.s32 %v211, %v231
    %v262 = vadd.s32 %v212, %v233
    %v263 = vadd.s32 %v213, %v235
    %v264 = vadd.s32 %v214, %v237
    %v265 = vadd.s32 %v215, %v239
    %v266 = vadd.s32 %v216, %v241
    %v267 = vadd.s32 %v217, %v243
    %v268 = vadd.s32 %v218, %v245
    %v269 = vadd.s32 %v219, %v247
    %v270 = vadd.s32 %v220, %v249
    %v271 = vadd.s32 %v221, %v251
    %v272 = vadd.s32 %v222, %v253
    %v273 = vadd.s32 %v223, %v255
    %v274 = vadd.s32 %v224, %v257
    %v275 = vadd.s32 %v225, %v259
    %vm276 = vcmask 1044480
    %v277 = vrot.slane %v157, 3
    %v278 = vrot.slane %v158, 3
    %v279 = vsel %vm276, %v277, %v278
    %v280 = vrot.slane %v159, 3
    %v281 = vsel %vm276, %v278, %v280
    %v282 = vrot.slane %v160, 3
    %v283 = vsel %vm276, %v280, %v282
    %v284 = vrot.slane %v161, 3
    %v285 = vsel %vm276, %v282, %v284
    %v286 = vrot.slane %v162, 3
    %v287 = vsel %vm276, %v284, %v286
    %v288 = vrot.slane %v163, 3
    %v289 = vsel %vm276, %v286, %v288
    %v290 = vrot.slane %v164, 3
    %v291 = vsel %vm276, %v288, %v290
    %v292 = vrot.slane %v165, 3
    %v293 = vsel %vm276, %v290, %v292
    %v294 = vrot.slane %v166, 3
    %v295 = vsel %vm276, %v292, %v294
    %v296 = vrot.slane %v167, 3
    %v297 = vsel %vm276, %v294, %v296
    %v298 = vrot.slane %v168, 3
    %v299 = vsel %vm276, %v296, %v298
    %v300 = vrot.slane %v169, 3
    %v301 = vsel %vm276, %v298, %v300
    %v302 = vrot.slane %v170, 3
    %v303 = vsel %vm276, %v300, %v302
    %v304 = vrot.slane %v171, 3
    %v305 = vsel %vm276, %v302, %v304
    %v306 = vrot.slane %v172, 3
    %v307 = vsel %vm276, %v304, %v306
    %v308 = vrot.slane %v175, 3
    %v309 = vsel %vm276, %v306, %v308
    %v310 = vadd.s32 %v260, %v279
    %v311 = vadd.s32 %v261, %v281
    %v312 = vadd.s32 %v262, %v283
    %v313 = vadd.s32 %v263, %v285
    %v314 = vadd.s32 %v264, %v287
    %v315 = vadd.s32 %v265, %v289
    %v316 = vadd.s32 %v266, %v291
    %v317 = vadd.s32 %v267, %v293
    %v318 = vadd.s32 %v268, %v295
    %v319 = vadd.s32 %v269, %v297
    %v320 = vadd.s32 %v270, %v299
    %v321 = vadd.s32 %v271, %v301
    %v322 = vadd.s32 %v272, %v303
    %v323 = vadd.s32 %v273, %v305
    %v324 = vadd.s32 %v274, %v307
    %v325 = vadd.s32 %v275, %v309
    %326 = vrot.lane.b32.xlu0 %v310, 1
    %v327 = vpop.permute.xlu0 %326
    %328 = vrot.lane.b32.xlu0 %v311, 1
    %v329 = vpop.permute.xlu0 %328
    %330 = vrot.lane.b32.xlu0 %v312, 1
    %v331 = vpop.permute.xlu0 %330
    %332 = vrot.lane.b32.xlu0 %v313, 1
    %v333 = vpop.permute.xlu0 %332
    %334 = vrot.lane.b32.xlu0 %v314, 1
    %v335 = vpop.permute.xlu0 %334
    %336 = vrot.lane.b32.xlu0 %v315, 1
    %v337 = vpop.permute.xlu0 %336
    %338 = vrot.lane.b32.xlu0 %v316, 1
    %v339 = vpop.permute.xlu0 %338
    %340 = vrot.lane.b32.xlu0 %v317, 1
    %v341 = vpop.permute.xlu0 %340
    %342 = vrot.lane.b32.xlu0 %v318, 1
    %v343 = vpop.permute.xlu0 %342
    %344 = vrot.lane.b32.xlu0 %v319, 1
    %v345 = vpop.permute.xlu0 %344
    %346 = vrot.lane.b32.xlu0 %v320, 1
    %v347 = vpop.permute.xlu0 %346
    %348 = vrot.lane.b32.xlu0 %v321, 1
    %v349 = vpop.permute.xlu0 %348
    %350 = vrot.lane.b32.xlu0 %v322, 1
    %v351 = vpop.permute.xlu0 %350
    %352 = vrot.lane.b32.xlu0 %v323, 1
    %v353 = vpop.permute.xlu0 %352
    %354 = vrot.lane.b32.xlu0 %v324, 1
    %v355 = vpop.permute.xlu0 %354
    %356 = vrot.lane.b32.xlu0 %v325, 1
    %v357 = vpop.permute.xlu0 %356
    %v358 = vsub.s32 %v310, %v327
    %v359 = vsub.s32 %v311, %v329
    %v360 = vsub.s32 %v312, %v331
    %v361 = vsub.s32 %v313, %v333
    %v362 = vsub.s32 %v314, %v335
    %v363 = vsub.s32 %v315, %v337
    %v364 = vsub.s32 %v316, %v339
    %v365 = vsub.s32 %v317, %v341
    %v366 = vsub.s32 %v318, %v343
    %v367 = vsub.s32 %v319, %v345
    %v368 = vsub.s32 %v320, %v347
    %v369 = vsub.s32 %v321, %v349
    %v370 = vsub.s32 %v322, %v351
    %v371 = vsub.s32 %v323, %v353
    %v372 = vsub.s32 %v324, %v355
    %v373 = vsub.s32 %v325, %v357
    %vm374 = vcmp.gt.s32.totalorder %v358, 0
    %vm375 = vcmp.gt.s32.totalorder %v359, 0
    %vm376 = vcmp.gt.s32.totalorder %v360, 0
    %vm377 = vcmp.gt.s32.totalorder %v361, 0
    %vm378 = vcmp.gt.s32.totalorder %v362, 0
    %vm379 = vcmp.gt.s32.totalorder %v363, 0
    %vm380 = vcmp.gt.s32.totalorder %v364, 0
    %vm381 = vcmp.gt.s32.totalorder %v365, 0
    %vm382 = vcmp.gt.s32.totalorder %v366, 0
    %vm383 = vcmp.gt.s32.totalorder %v367, 0
    %vm384 = vcmp.gt.s32.totalorder %v368, 0
    %vm385 = vcmp.gt.s32.totalorder %v369, 0
    %vm386 = vcmp.gt.s32.totalorder %v370, 0
    %vm387 = vcmp.gt.s32.totalorder %v371, 0
    %vm388 = vcmp.gt.s32.totalorder %v372, 0
    %vm389 = vcmp.gt.s32.totalorder %v373, 0
    %390 = vrot.lane.b32.xlu0 %v310, 127
    %v391 = vpop.permute.xlu0 %390
    %392 = vrot.lane.b32.xlu0 %v311, 127
    %v393 = vpop.permute.xlu0 %392
    %394 = vrot.lane.b32.xlu0 %v312, 127
    %v395 = vpop.permute.xlu0 %394
    %396 = vrot.lane.b32.xlu0 %v313, 127
    %v397 = vpop.permute.xlu0 %396
    %398 = vrot.lane.b32.xlu0 %v314, 127
    %v399 = vpop.permute.xlu0 %398
    %400 = vrot.lane.b32.xlu0 %v315, 127
    %v401 = vpop.permute.xlu0 %400
    %402 = vrot.lane.b32.xlu0 %v316, 127
    %v403 = vpop.permute.xlu0 %402
    %404 = vrot.lane.b32.xlu0 %v317, 127
    %v405 = vpop.permute.xlu0 %404
    %406 = vrot.lane.b32.xlu0 %v318, 127
    %v407 = vpop.permute.xlu0 %406
    %408 = vrot.lane.b32.xlu0 %v319, 127
    %v409 = vpop.permute.xlu0 %408
    %410 = vrot.lane.b32.xlu0 %v320, 127
    %v411 = vpop.permute.xlu0 %410
    %412 = vrot.lane.b32.xlu0 %v321, 127
    %v413 = vpop.permute.xlu0 %412
    %414 = vrot.lane.b32.xlu0 %v322, 127
    %v415 = vpop.permute.xlu0 %414
    %416 = vrot.lane.b32.xlu0 %v323, 127
    %v417 = vpop.permute.xlu0 %416
    %418 = vrot.lane.b32.xlu0 %v324, 127
    %v419 = vpop.permute.xlu0 %418
    %420 = vrot.lane.b32.xlu0 %v325, 127
    %v421 = vpop.permute.xlu0 %420
    %v422 = vsub.s32 %v310, %v391
    %v423 = vsub.s32 %v311, %v393
    %v424 = vsub.s32 %v312, %v395
    %v425 = vsub.s32 %v313, %v397
    %v426 = vsub.s32 %v314, %v399
    %v427 = vsub.s32 %v315, %v401
    %v428 = vsub.s32 %v316, %v403
    %v429 = vsub.s32 %v317, %v405
    %v430 = vsub.s32 %v318, %v407
    %v431 = vsub.s32 %v319, %v409
    %v432 = vsub.s32 %v320, %v411
    %v433 = vsub.s32 %v321, %v413
    %v434 = vsub.s32 %v322, %v415
    %v435 = vsub.s32 %v323, %v417
    %v436 = vsub.s32 %v324, %v419
    %v437 = vsub.s32 %v325, %v421
    %vm438 = vcmp.gt.s32.totalorder %v422, 0
    %vm439 = vcmp.gt.s32.totalorder %v423, 0
    %vm440 = vcmp.gt.s32.totalorder %v424, 0
    %vm441 = vcmp.gt.s32.totalorder %v425, 0
    %vm442 = vcmp.gt.s32.totalorder %v426, 0
    %vm443 = vcmp.gt.s32.totalorder %v427, 0
    %vm444 = vcmp.gt.s32.totalorder %v428, 0
    %vm445 = vcmp.gt.s32.totalorder %v429, 0
    %vm446 = vcmp.gt.s32.totalorder %v430, 0
    %vm447 = vcmp.gt.s32.totalorder %v431, 0
    %vm448 = vcmp.gt.s32.totalorder %v432, 0
    %vm449 = vcmp.gt.s32.totalorder %v433, 0
    %vm450 = vcmp.gt.s32.totalorder %v434, 0
    %vm451 = vcmp.gt.s32.totalorder %v435, 0
    %vm452 = vcmp.gt.s32.totalorder %v436, 0
    %vm453 = vcmp.gt.s32.totalorder %v437, 0
    %vm454 = vmxor %vm374, %vm438
    %vm455 = vmxor %vm375, %vm439
    %vm456 = vmxor %vm376, %vm440
    %vm457 = vmxor %vm377, %vm441
    %vm458 = vmxor %vm378, %vm442
    %vm459 = vmxor %vm379, %vm443
    %vm460 = vmxor %vm380, %vm444
    %vm461 = vmxor %vm381, %vm445
    %vm462 = vmxor %vm382, %vm446
    %vm463 = vmxor %vm383, %vm447
    %vm464 = vmxor %vm384, %vm448
    %vm465 = vmxor %vm385, %vm449
    %vm466 = vmxor %vm386, %vm450
    %vm467 = vmxor %vm387, %vm451
    %vm468 = vmxor %vm388, %vm452
    %vm469 = vmxor %vm389, %vm453
    %vm470 = vmand %vm374, %vm438
    %vm471 = vmand %vm375, %vm439
    %vm472 = vmand %vm376, %vm440
    %vm473 = vmand %vm377, %vm441
    %vm474 = vmand %vm378, %vm442
    %vm475 = vmand %vm379, %vm443
    %vm476 = vmand %vm380, %vm444
    %vm477 = vmand %vm381, %vm445
    %vm478 = vmand %vm382, %vm446
    %vm479 = vmand %vm383, %vm447
    %vm480 = vmand %vm384, %vm448
    %vm481 = vmand %vm385, %vm449
    %vm482 = vmand %vm386, %vm450
    %vm483 = vmand %vm387, %vm451
    %vm484 = vmand %vm388, %vm452
    %vm485 = vmand %vm389, %vm453
    %v486 = vsel %vm470, 254, 0
    %v487 = vsel %vm471, 254, 0
    %v488 = vsel %vm472, 254, 0
    %v489 = vsel %vm473, 254, 0
    %v490 = vsel %vm474, 254, 0
    %v491 = vsel %vm475, 254, 0
    %v492 = vsel %vm476, 254, 0
    %v493 = vsel %vm477, 254, 0
    %v494 = vsel %vm478, 254, 0
    %v495 = vsel %vm479, 254, 0
    %v496 = vsel %vm480, 254, 0
    %v497 = vsel %vm481, 254, 0
    %v498 = vsel %vm482, 254, 0
    %v499 = vsel %vm483, 254, 0
    %v500 = vsel %vm484, 254, 0
    %v501 = vsel %vm485, 254, 0
    %v502 = vsel %vm454, 255, %v486
    %v503 = vsel %vm455, 255, %v487
    %v504 = vsel %vm456, 255, %v488
    %v505 = vsel %vm457, 255, %v489
    %v506 = vsel %vm458, 255, %v490
    %v507 = vsel %vm459, 255, %v491
    %v508 = vsel %vm460, 255, %v492
    %v509 = vsel %vm461, 255, %v493
    %v510 = vsel %vm462, 255, %v494
    %v511 = vsel %vm463, 255, %v495
    %v512 = vsel %vm464, 255, %v496
    %v513 = vsel %vm465, 255, %v497
    %v514 = vsel %vm466, 255, %v498
    %v515 = vsel %vm467, 255, %v499
    %v516 = vsel %vm468, 255, %v500
    %v517 = vsel %vm469, 255, %v501
    %s518 = scalar_lea.vmem [#allocation2], 32
    %v519 = vld [vmem:[%s518] sm:$0xff]
    %v520 = vld [vmem:[%s518 + $0x8] sm:$0xff]
    %v521 = vld [vmem:[%s518 + $0x10] sm:$0xff]
    %v522 = vld [vmem:[%s518 + $0x18] sm:$0xff]
    %v523 = vunpack.c.0.s8 %v519
    %v524 = vunpack.c.1.s8 %v519
    %v525 = vunpack.c.2.s8 %v519
    %v526 = vunpack.c.3.s8 %v519
    %v527 = vunpack.c.0.s8 %v520
    %v528 = vunpack.c.1.s8 %v520
    %v529 = vunpack.c.2.s8 %v520
    %v530 = vunpack.c.3.s8 %v520
    %v531 = vunpack.c.0.s8 %v521
    %v532 = vunpack.c.1.s8 %v521
    %v533 = vunpack.c.2.s8 %v521
    %v534 = vunpack.c.3.s8 %v521
    %v535 = vunpack.c.0.s8 %v522
    %v536 = vunpack.c.1.s8 %v522
    %v537 = vunpack.c.2.s8 %v522
    %v538 = vunpack.c.3.s8 %v522
    %v539 = vand.u32 %v523, 255
    %v540 = vand.u32 %v524, 255
    %v541 = vand.u32 %v525, 255
    %v542 = vand.u32 %v526, 255
    %v543 = vand.u32 %v527, 255
    %v544 = vand.u32 %v528, 255
    %v545 = vand.u32 %v529, 255
    %v546 = vand.u32 %v530, 255
    %v547 = vand.u32 %v531, 255
    %v548 = vand.u32 %v532, 255
    %v549 = vand.u32 %v533, 255
    %v550 = vand.u32 %v534, 255
    %v551 = vand.u32 %v535, 255
    %v552 = vand.u32 %v536, 255
    %v553 = vand.u32 %v537, 255
    %v554 = vand.u32 %v538, 255
    %s555 = scalar_lea.vmem [#allocation3], 8
    %v556 = vld [vmem:[%s555] sm:$0xff]
    %v557 = vunpack.c.0.s8 %v556
    %v558 = vand.u32 %v557, 255
    %v559 = vrot.slane %v539, 1
    %v560 = vrot.slane %v540, 1
    %v561 = vsel %vm176, %v559, %v560
    %v562 = vrot.slane %v541, 1
    %v563 = vsel %vm176, %v560, %v562
    %v564 = vrot.slane %v542, 1
    %v565 = vsel %vm176, %v562, %v564
    %v566 = vrot.slane %v543, 1
    %v567 = vsel %vm176, %v564, %v566
    %v568 = vrot.slane %v544, 1
    %v569 = vsel %vm176, %v566, %v568
    %v570 = vrot.slane %v545, 1
    %v571 = vsel %vm176, %v568, %v570
    %v572 = vrot.slane %v546, 1
    %v573 = vsel %vm176, %v570, %v572
    %v574 = vrot.slane %v547, 1
    %v575 = vsel %vm176, %v572, %v574
    %v576 = vrot.slane %v548, 1
    %v577 = vsel %vm176, %v574, %v576
    %v578 = vrot.slane %v549, 1
    %v579 = vsel %vm176, %v576, %v578
    %v580 = vrot.slane %v550, 1
    %v581 = vsel %vm176, %v578, %v580
    %v582 = vrot.slane %v551, 1
    %v583 = vsel %vm176, %v580, %v582
    %v584 = vrot.slane %v552, 1
    %v585 = vsel %vm176, %v582, %v584
    %v586 = vrot.slane %v553, 1
    %v587 = vsel %vm176, %v584, %v586
    %v588 = vrot.slane %v554, 1
    %v589 = vsel %vm176, %v586, %v588
    %v590 = vrot.slane %v558, 1
    %v591 = vsel %vm176, %v588, %v590
    %v592 = vadd.s32 %v539, %v561
    %v593 = vadd.s32 %v540, %v563
    %v594 = vadd.s32 %v541, %v565
    %v595 = vadd.s32 %v542, %v567
    %v596 = vadd.s32 %v543, %v569
    %v597 = vadd.s32 %v544, %v571
    %v598 = vadd.s32 %v545, %v573
    %v599 = vadd.s32 %v546, %v575
    %v600 = vadd.s32 %v547, %v577
    %v601 = vadd.s32 %v548, %v579
    %v602 = vadd.s32 %v549, %v581
    %v603 = vadd.s32 %v550, %v583
    %v604 = vadd.s32 %v551, %v585
    %v605 = vadd.s32 %v552, %v587
    %v606 = vadd.s32 %v553, %v589
    %v607 = vadd.s32 %v554, %v591
    %v608 = vrot.slane %v539, 2
    %v609 = vrot.slane %v540, 2
    %v610 = vsel %vm226, %v608, %v609
    %v611 = vrot.slane %v541, 2
    %v612 = vsel %vm226, %v609, %v611
    %v613 = vrot.slane %v542, 2
    %v614 = vsel %vm226, %v611, %v613
    %v615 = vrot.slane %v543, 2
    %v616 = vsel %vm226, %v613, %v615
    %v617 = vrot.slane %v544, 2
    %v618 = vsel %vm226, %v615, %v617
    %v619 = vrot.slane %v545, 2
    %v620 = vsel %vm226, %v617, %v619
    %v621 = vrot.slane %v546, 2
    %v622 = vsel %vm226, %v619, %v621
    %v623 = vrot.slane %v547, 2
    %v624 = vsel %vm226, %v621, %v623
    %v625 = vrot.slane %v548, 2
    %v626 = vsel %vm226, %v623, %v625
    %v627 = vrot.slane %v549, 2
    %v628 = vsel %vm226, %v625, %v627
    %v629 = vrot.slane %v550, 2
    %v630 = vsel %vm226, %v627, %v629
    %v631 = vrot.slane %v551, 2
    %v632 = vsel %vm226, %v629, %v631
    %v633 = vrot.slane %v552, 2
    %v634 = vsel %vm226, %v631, %v633
    %v635 = vrot.slane %v553, 2
    %v636 = vsel %vm226, %v633, %v635
    %v637 = vrot.slane %v554, 2
    %v638 = vsel %vm226, %v635, %v637
    %v639 = vrot.slane %v558, 2
    %v640 = vsel %vm226, %v637, %v639
    %v641 = vadd.s32 %v592, %v610
    %v642 = vadd.s32 %v593, %v612
    %v643 = vadd.s32 %v594, %v614
    %v644 = vadd.s32 %v595, %v616
    %v645 = vadd.s32 %v596, %v618
    %v646 = vadd.s32 %v597, %v620
    %v647 = vadd.s32 %v598, %v622
    %v648 = vadd.s32 %v599, %v624
    %v649 = vadd.s32 %v600, %v626
    %v650 = vadd.s32 %v601, %v628
    %v651 = vadd.s32 %v602, %v630
    %v652 = vadd.s32 %v603, %v632
    %v653 = vadd.s32 %v604, %v634
    %v654 = vadd.s32 %v605, %v636
    %v655 = vadd.s32 %v606, %v638
    %v656 = vadd.s32 %v607, %v640
    %v657 = vrot.slane %v539, 3
    %v658 = vrot.slane %v540, 3
    %v659 = vsel %vm276, %v657, %v658
    %v660 = vrot.slane %v541, 3
    %v661 = vsel %vm276, %v658, %v660
    %v662 = vrot.slane %v542, 3
    %v663 = vsel %vm276, %v660, %v662
    %v664 = vrot.slane %v543, 3
    %v665 = vsel %vm276, %v662, %v664
    %v666 = vrot.slane %v544, 3
    %v667 = vsel %vm276, %v664, %v666
    %v668 = vrot.slane %v545, 3
    %v669 = vsel %vm276, %v666, %v668
    %v670 = vrot.slane %v546, 3
    %v671 = vsel %vm276, %v668, %v670
    %v672 = vrot.slane %v547, 3
    %v673 = vsel %vm276, %v670, %v672
    %v674 = vrot.slane %v548, 3
    %v675 = vsel %vm276, %v672, %v674
    %v676 = vrot.slane %v549, 3
    %v677 = vsel %vm276, %v674, %v676
    %v678 = vrot.slane %v550, 3
    %v679 = vsel %vm276, %v676, %v678
    %v680 = vrot.slane %v551, 3
    %v681 = vsel %vm276, %v678, %v680
    %v682 = vrot.slane %v552, 3
    %v683 = vsel %vm276, %v680, %v682
    %v684 = vrot.slane %v553, 3
    %v685 = vsel %vm276, %v682, %v684
    %v686 = vrot.slane %v554, 3
    %v687 = vsel %vm276, %v684, %v686
    %v688 = vrot.slane %v558, 3
    %v689 = vsel %vm276, %v686, %v688
    %v690 = vadd.s32 %v641, %v659
    %v691 = vadd.s32 %v642, %v661
    %v692 = vadd.s32 %v643, %v663
    %v693 = vadd.s32 %v644, %v665
    %v694 = vadd.s32 %v645, %v667
    %v695 = vadd.s32 %v646, %v669
    %v696 = vadd.s32 %v647, %v671
    %v697 = vadd.s32 %v648, %v673
    %v698 = vadd.s32 %v649, %v675
    %v699 = vadd.s32 %v650, %v677
    %v700 = vadd.s32 %v651, %v679
    %v701 = vadd.s32 %v652, %v681
    %v702 = vadd.s32 %v653, %v683
    %v703 = vadd.s32 %v654, %v685
    %v704 = vadd.s32 %v655, %v687
    %v705 = vadd.s32 %v656, %v689
    %706 = vrot.lane.b32.xlu0 %v690, 1
    %v707 = vpop.permute.xlu0 %706
    %708 = vrot.lane.b32.xlu0 %v691, 1
    %v709 = vpop.permute.xlu0 %708
    %710 = vrot.lane.b32.xlu0 %v692, 1
    %v711 = vpop.permute.xlu0 %710
    %712 = vrot.lane.b32.xlu0 %v693, 1
    %v713 = vpop.permute.xlu0 %712
    %714 = vrot.lane.b32.xlu0 %v694, 1
    %v715 = vpop.permute.xlu0 %714
    %716 = vrot.lane.b32.xlu0 %v695, 1
    %v717 = vpop.permute.xlu0 %716
    %718 = vrot.lane.b32.xlu0 %v696, 1
    %v719 = vpop.permute.xlu0 %718
    %720 = vrot.lane.b32.xlu0 %v697, 1
    %v721 = vpop.permute.xlu0 %720
    %722 = vrot.lane.b32.xlu0 %v698, 1
    %v723 = vpop.permute.xlu0 %722
    %724 = vrot.lane.b32.xlu0 %v699, 1
    %v725 = vpop.permute.xlu0 %724
    %726 = vrot.lane.b32.xlu0 %v700, 1
    %v727 = vpop.permute.xlu0 %726
    %728 = vrot.lane.b32.xlu0 %v701, 1
    %v729 = vpop.permute.xlu0 %728
    %730 = vrot.lane.b32.xlu0 %v702, 1
    %v731 = vpop.permute.xlu0 %730
    %732 = vrot.lane.b32.xlu0 %v703, 1
    %v733 = vpop.permute.xlu0 %732
    %734 = vrot.lane.b32.xlu0 %v704, 1
    %v735 = vpop.permute.xlu0 %734
    %736 = vrot.lane.b32.xlu0 %v705, 1
    %v737 = vpop.permute.xlu0 %736
    %v738 = vsub.s32 %v690, %v707
    %v739 = vsub.s32 %v691, %v709
    %v740 = vsub.s32 %v692, %v711
    %v741 = vsub.s32 %v693, %v713
    %v742 = vsub.s32 %v694, %v715
    %v743 = vsub.s32 %v695, %v717
    %v744 = vsub.s32 %v696, %v719
    %v745 = vsub.s32 %v697, %v721
    %v746 = vsub.s32 %v698, %v723
    %v747 = vsub.s32 %v699, %v725
    %v748 = vsub.s32 %v700, %v727
    %v749 = vsub.s32 %v701, %v729
    %v750 = vsub.s32 %v702, %v731
    %v751 = vsub.s32 %v703, %v733
    %v752 = vsub.s32 %v704, %v735
    %v753 = vsub.s32 %v705, %v737
    %vm754 = vcmp.gt.s32.totalorder %v738, 0
    %vm755 = vcmp.gt.s32.totalorder %v739, 0
    %vm756 = vcmp.gt.s32.totalorder %v740, 0
    %vm757 = vcmp.gt.s32.totalorder %v741, 0
    %vm758 = vcmp.gt.s32.totalorder %v742, 0
    %vm759 = vcmp.gt.s32.totalorder %v743, 0
    %vm760 = vcmp.gt.s32.totalorder %v744, 0
    %vm761 = vcmp.gt.s32.totalorder %v745, 0
    %vm762 = vcmp.gt.s32.totalorder %v746, 0
    %vm763 = vcmp.gt.s32.totalorder %v747, 0
    %vm764 = vcmp.gt.s32.totalorder %v748, 0
    %vm765 = vcmp.gt.s32.totalorder %v749, 0
    %vm766 = vcmp.gt.s32.totalorder %v750, 0
    %vm767 = vcmp.gt.s32.totalorder %v751, 0
    %vm768 = vcmp.gt.s32.totalorder %v752, 0
    %vm769 = vcmp.gt.s32.totalorder %v753, 0
    %770 = vrot.lane.b32.xlu0 %v690, 127
    %v771 = vpop.permute.xlu0 %770
    %772 = vrot.lane.b32.xlu0 %v691, 127
    %v773 = vpop.permute.xlu0 %772
    %774 = vrot.lane.b32.xlu0 %v692, 127
    %v775 = vpop.permute.xlu0 %774
    %776 = vrot.lane.b32.xlu0 %v693, 127
    %v777 = vpop.permute.xlu0 %776
    %778 = vrot.lane.b32.xlu0 %v694, 127
    %v779 = vpop.permute.xlu0 %778
    %780 = vrot.lane.b32.xlu0 %v695, 127
    %v781 = vpop.permute.xlu0 %780
    %782 = vrot.lane.b32.xlu0 %v696, 127
    %v783 = vpop.permute.xlu0 %782
    %784 = vrot.lane.b32.xlu0 %v697, 127
    %v785 = vpop.permute.xlu0 %784
    %786 = vrot.lane.b32.xlu0 %v698, 127
    %v787 = vpop.permute.xlu0 %786
    %788 = vrot.lane.b32.xlu0 %v699, 127
    %v789 = vpop.permute.xlu0 %788
    %790 = vrot.lane.b32.xlu0 %v700, 127
    %v791 = vpop.permute.xlu0 %790
    %792 = vrot.lane.b32.xlu0 %v701, 127
    %v793 = vpop.permute.xlu0 %792
    %794 = vrot.lane.b32.xlu0 %v702, 127
    %v795 = vpop.permute.xlu0 %794
    %796 = vrot.lane.b32.xlu0 %v703, 127
    %v797 = vpop.permute.xlu0 %796
    %798 = vrot.lane.b32.xlu0 %v704, 127
    %v799 = vpop.permute.xlu0 %798
    %800 = vrot.lane.b32.xlu0 %v705, 127
    %v801 = vpop.permute.xlu0 %800
    %v802 = vsub.s32 %v690, %v771
    %v803 = vsub.s32 %v691, %v773
    %v804 = vsub.s32 %v692, %v775
    %v805 = vsub.s32 %v693, %v777
    %v806 = vsub.s32 %v694, %v779
    %v807 = vsub.s32 %v695, %v781
    %v808 = vsub.s32 %v696, %v783
    %v809 = vsub.s32 %v697, %v785
    %v810 = vsub.s32 %v698, %v787
    %v811 = vsub.s32 %v699, %v789
    %v812 = vsub.s32 %v700, %v791
    %v813 = vsub.s32 %v701, %v793
    %v814 = vsub.s32 %v702, %v795
    %v815 = vsub.s32 %v703, %v797
    %v816 = vsub.s32 %v704, %v799
    %v817 = vsub.s32 %v705, %v801
    %vm818 = vcmp.gt.s32.totalorder %v802, 0
    %vm819 = vcmp.gt.s32.totalorder %v803, 0
    %vm820 = vcmp.gt.s32.totalorder %v804, 0
    %vm821 = vcmp.gt.s32.totalorder %v805, 0
    %vm822 = vcmp.gt.s32.totalorder %v806, 0
    %vm823 = vcmp.gt.s32.totalorder %v807, 0
    %vm824 = vcmp.gt.s32.totalorder %v808, 0
    %vm825 = vcmp.gt.s32.totalorder %v809, 0
    %vm826 = vcmp.gt.s32.totalorder %v810, 0
    %vm827 = vcmp.gt.s32.totalorder %v811, 0
    %vm828 = vcmp.gt.s32.totalorder %v812, 0
    %vm829 = vcmp.gt.s32.totalorder %v813, 0
    %vm830 = vcmp.gt.s32.totalorder %v814, 0
    %vm831 = vcmp.gt.s32.totalorder %v815, 0
    %vm832 = vcmp.gt.s32.totalorder %v816, 0
    %vm833 = vcmp.gt.s32.totalorder %v817, 0
    %vm834 = vmxor %vm754, %vm818
    %vm835 = vmxor %vm755, %vm819
    %vm836 = vmxor %vm756, %vm820
    %vm837 = vmxor %vm757, %vm821
    %vm838 = vmxor %vm758, %vm822
    %vm839 = vmxor %vm759, %vm823
    %vm840 = vmxor %vm760, %vm824
    %vm841 = vmxor %vm761, %vm825
    %vm842 = vmxor %vm762, %vm826
    %vm843 = vmxor %vm763, %vm827
    %vm844 = vmxor %vm764, %vm828
    %vm845 = vmxor %vm765, %vm829
    %vm846 = vmxor %vm766, %vm830
    %vm847 = vmxor %vm767, %vm831
    %vm848 = vmxor %vm768, %vm832
    %vm849 = vmxor %vm769, %vm833
    %vm850 = vmand %vm754, %vm818
    %vm851 = vmand %vm755, %vm819
    %vm852 = vmand %vm756, %vm820
    %vm853 = vmand %vm757, %vm821
    %vm854 = vmand %vm758, %vm822
    %vm855 = vmand %vm759, %vm823
    %vm856 = vmand %vm760, %vm824
    %vm857 = vmand %vm761, %vm825
    %vm858 = vmand %vm762, %vm826
    %vm859 = vmand %vm763, %vm827
    %vm860 = vmand %vm764, %vm828
    %vm861 = vmand %vm765, %vm829
    %vm862 = vmand %vm766, %vm830
    %vm863 = vmand %vm767, %vm831
    %vm864 = vmand %vm768, %vm832
    %vm865 = vmand %vm769, %vm833
    %v866 = vsel %vm850, 254, 0
    %v867 = vsel %vm851, 254, 0
    %v868 = vsel %vm852, 254, 0
    %v869 = vsel %vm853, 254, 0
    %v870 = vsel %vm854, 254, 0
    %v871 = vsel %vm855, 254, 0
    %v872 = vsel %vm856, 254, 0
    %v873 = vsel %vm857, 254, 0
    %v874 = vsel %vm858, 254, 0
    %v875 = vsel %vm859, 254, 0
    %v876 = vsel %vm860, 254, 0
    %v877 = vsel %vm861, 254, 0
    %v878 = vsel %vm862, 254, 0
    %v879 = vsel %vm863, 254, 0
    %v880 = vsel %vm864, 254, 0
    %v881 = vsel %vm865, 254, 0
    %v882 = vsel %vm834, 255, %v866
    %v883 = vsel %vm835, 255, %v867
    %v884 = vsel %vm836, 255, %v868
    %v885 = vsel %vm837, 255, %v869
    %v886 = vsel %vm838, 255, %v870
    %v887 = vsel %vm839, 255, %v871
    %v888 = vsel %vm840, 255, %v872
    %v889 = vsel %vm841, 255, %v873
    %v890 = vsel %vm842, 255, %v874
    %v891 = vsel %vm843, 255, %v875
    %v892 = vsel %vm844, 255, %v876
    %v893 = vsel %vm845, 255, %v877
    %v894 = vsel %vm846, 255, %v878
    %v895 = vsel %vm847, 255, %v879
    %v896 = vsel %vm848, 255, %v880
    %v897 = vsel %vm849, 255, %v881
    %vm898 = vcmp.gt.s32.totalorder %v502, %v882
    %v899 = vsel %vm898, %v502, %v882
    %vm900 = vcmp.gt.s32.totalorder %v503, %v883
    %v901 = vsel %vm900, %v503, %v883
    %vm902 = vcmp.gt.s32.totalorder %v504, %v884
    %v903 = vsel %vm902, %v504, %v884
    %vm904 = vcmp.gt.s32.totalorder %v505, %v885
    %v905 = vsel %vm904, %v505, %v885
    %vm906 = vcmp.gt.s32.totalorder %v506, %v886
    %v907 = vsel %vm906, %v506, %v886
    %vm908 = vcmp.gt.s32.totalorder %v507, %v887
    %v909 = vsel %vm908, %v507, %v887
    %vm910 = vcmp.gt.s32.totalorder %v508, %v888
    %v911 = vsel %vm910, %v508, %v888
    %vm912 = vcmp.gt.s32.totalorder %v509, %v889
    %v913 = vsel %vm912, %v509, %v889
    %vm914 = vcmp.gt.s32.totalorder %v510, %v890
    %v915 = vsel %vm914, %v510, %v890
    %vm916 = vcmp.gt.s32.totalorder %v511, %v891
    %v917 = vsel %vm916, %v511, %v891
    %vm918 = vcmp.gt.s32.totalorder %v512, %v892
    %v919 = vsel %vm918, %v512, %v892
    %vm920 = vcmp.gt.s32.totalorder %v513, %v893
    %v921 = vsel %vm920, %v513, %v893
    %vm922 = vcmp.gt.s32.totalorder %v514, %v894
    %v923 = vsel %vm922, %v514, %v894
    %vm924 = vcmp.gt.s32.totalorder %v515, %v895
    %v925 = vsel %vm924, %v515, %v895
    %vm926 = vcmp.gt.s32.totalorder %v516, %v896
    %v927 = vsel %vm926, %v516, %v896
    %vm928 = vcmp.gt.s32.totalorder %v517, %v897
    %v929 = vsel %vm928, %v517, %v897
    %s930 = scalar_lea.vmem [#allocation2], 64
    %v931 = vld [vmem:[%s930] sm:$0xff]
    %v932 = vld [vmem:[%s930 + $0x8] sm:$0xff]
    %v933 = vld [vmem:[%s930 + $0x10] sm:$0xff]
    %v934 = vld [vmem:[%s930 + $0x18] sm:$0xff]
    %v935 = vunpack.c.0.s8 %v931
    %v936 = vunpack.c.1.s8 %v931
    %v937 = vunpack.c.2.s8 %v931
    %v938 = vunpack.c.3.s8 %v931
    %v939 = vunpack.c.0.s8 %v932
    %v940 = vunpack.c.1.s8 %v932
    %v941 = vunpack.c.2.s8 %v932
    %v942 = vunpack.c.3.s8 %v932
    %v943 = vunpack.c.0.s8 %v933
    %v944 = vunpack.c.1.s8 %v933
    %v945 = vunpack.c.2.s8 %v933
    %v946 = vunpack.c.3.s8 %v933
    %v947 = vunpack.c.0.s8 %v934
    %v948 = vunpack.c.1.s8 %v934
    %v949 = vunpack.c.2.s8 %v934
    %v950 = vunpack.c.3.s8 %v934
    %v951 = vand.u32 %v935, 255
    %v952 = vand.u32 %v936, 255
    %v953 = vand.u32 %v937, 255
    %v954 = vand.u32 %v938, 255
    %v955 = vand.u32 %v939, 255
    %v956 = vand.u32 %v940, 255
    %v957 = vand.u32 %v941, 255
    %v958 = vand.u32 %v942, 255
    %v959 = vand.u32 %v943, 255
    %v960 = vand.u32 %v944, 255
    %v961 = vand.u32 %v945, 255
    %v962 = vand.u32 %v946, 255
    %v963 = vand.u32 %v947, 255
    %v964 = vand.u32 %v948, 255
    %v965 = vand.u32 %v949, 255
    %v966 = vand.u32 %v950, 255
    %s967 = scalar_lea.vmem [#allocation3], 16
    %v968 = vld [vmem:[%s967] sm:$0xff]
    %v969 = vunpack.c.0.s8 %v968
    %v970 = vand.u32 %v969, 255
    %v971 = vrot.slane %v951, 1
    %v972 = vrot.slane %v952, 1
    %v973 = vsel %vm176, %v971, %v972
    %v974 = vrot.slane %v953, 1
    %v975 = vsel %vm176, %v972, %v974
    %v976 = vrot.slane %v954, 1
    %v977 = vsel %vm176, %v974, %v976
    %v978 = vrot.slane %v955, 1
    %v979 = vsel %vm176, %v976, %v978
    %v980 = vrot.slane %v956, 1
    %v981 = vsel %vm176, %v978, %v980
    %v982 = vrot.slane %v957, 1
    %v983 = vsel %vm176, %v980, %v982
    %v984 = vrot.slane %v958, 1
    %v985 = vsel %vm176, %v982, %v984
    %v986 = vrot.slane %v959, 1
    %v987 = vsel %vm176, %v984, %v986
    %v988 = vrot.slane %v960, 1
    %v989 = vsel %vm176, %v986, %v988
    %v990 = vrot.slane %v961, 1
    %v991 = vsel %vm176, %v988, %v990
    %v992 = vrot.slane %v962, 1
    %v993 = vsel %vm176, %v990, %v992
    %v994 = vrot.slane %v963, 1
    %v995 = vsel %vm176, %v992, %v994
    %v996 = vrot.slane %v964, 1
    %v997 = vsel %vm176, %v994, %v996
    %v998 = vrot.slane %v965, 1
    %v999 = vsel %vm176, %v996, %v998
    %v1000 = vrot.slane %v966, 1
    %v1001 = vsel %vm176, %v998, %v1000
    %v1002 = vrot.slane %v970, 1
    %v1003 = vsel %vm176, %v1000, %v1002
    %v1004 = vadd.s32 %v951, %v973
    %v1005 = vadd.s32 %v952, %v975
    %v1006 = vadd.s32 %v953, %v977
    %v1007 = vadd.s32 %v954, %v979
    %v1008 = vadd.s32 %v955, %v981
    %v1009 = vadd.s32 %v956, %v983
    %v1010 = vadd.s32 %v957, %v985
    %v1011 = vadd.s32 %v958, %v987
    %v1012 = vadd.s32 %v959, %v989
    %v1013 = vadd.s32 %v960, %v991
    %v1014 = vadd.s32 %v961, %v993
    %v1015 = vadd.s32 %v962, %v995
    %v1016 = vadd.s32 %v963, %v997
    %v1017 = vadd.s32 %v964, %v999
    %v1018 = vadd.s32 %v965, %v1001
    %v1019 = vadd.s32 %v966, %v1003
    %v1020 = vrot.slane %v951, 2
    %v1021 = vrot.slane %v952, 2
    %v1022 = vsel %vm226, %v1020, %v1021
    %v1023 = vrot.slane %v953, 2
    %v1024 = vsel %vm226, %v1021, %v1023
    %v1025 = vrot.slane %v954, 2
    %v1026 = vsel %vm226, %v1023, %v1025
    %v1027 = vrot.slane %v955, 2
    %v1028 = vsel %vm226, %v1025, %v1027
    %v1029 = vrot.slane %v956, 2
    %v1030 = vsel %vm226, %v1027, %v1029
    %v1031 = vrot.slane %v957, 2
    %v1032 = vsel %vm226, %v1029, %v1031
    %v1033 = vrot.slane %v958, 2
    %v1034 = vsel %vm226, %v1031, %v1033
    %v1035 = vrot.slane %v959, 2
    %v1036 = vsel %vm226, %v1033, %v1035
    %v1037 = vrot.slane %v960, 2
    %v1038 = vsel %vm226, %v1035, %v1037
    %v1039 = vrot.slane %v961, 2
    %v1040 = vsel %vm226, %v1037, %v1039
    %v1041 = vrot.slane %v962, 2
    %v1042 = vsel %vm226, %v1039, %v1041
    %v1043 = vrot.slane %v963, 2
    %v1044 = vsel %vm226, %v1041, %v1043
    %v1045 = vrot.slane %v964, 2
    %v1046 = vsel %vm226, %v1043, %v1045
    %v1047 = vrot.slane %v965, 2
    %v1048 = vsel %vm226, %v1045, %v1047
    %v1049 = vrot.slane %v966, 2
    %v1050 = vsel %vm226, %v1047, %v1049
    %v1051 = vrot.slane %v970, 2
    %v1052 = vsel %vm226, %v1049, %v1051
    %v1053 = vadd.s32 %v1004, %v1022
    %v1054 = vadd.s32 %v1005, %v1024
    %v1055 = vadd.s32 %v1006, %v1026
    %v1056 = vadd.s32 %v1007, %v1028
    %v1057 = vadd.s32 %v1008, %v1030
    %v1058 = vadd.s32 %v1009, %v1032
    %v1059 = vadd.s32 %v1010, %v1034
    %v1060 = vadd.s32 %v1011, %v1036
    %v1061 = vadd.s32 %v1012, %v1038
    %v1062 = vadd.s32 %v1013, %v1040
    %v1063 = vadd.s32 %v1014, %v1042
    %v1064 = vadd.s32 %v1015, %v1044
    %v1065 = vadd.s32 %v1016, %v1046
    %v1066 = vadd.s32 %v1017, %v1048
    %v1067 = vadd.s32 %v1018, %v1050
    %v1068 = vadd.s32 %v1019, %v1052
    %v1069 = vrot.slane %v951, 3
    %v1070 = vrot.slane %v952, 3
    %v1071 = vsel %vm276, %v1069, %v1070
    %v1072 = vrot.slane %v953, 3
    %v1073 = vsel %vm276, %v1070, %v1072
    %v1074 = vrot.slane %v954, 3
    %v1075 = vsel %vm276, %v1072, %v1074
    %v1076 = vrot.slane %v955, 3
    %v1077 = vsel %vm276, %v1074, %v1076
    %v1078 = vrot.slane %v956, 3
    %v1079 = vsel %vm276, %v1076, %v1078
    %v1080 = vrot.slane %v957, 3
    %v1081 = vsel %vm276, %v1078, %v1080
    %v1082 = vrot.slane %v958, 3
    %v1083 = vsel %vm276, %v1080, %v1082
    %v1084 = vrot.slane %v959, 3
    %v1085 = vsel %vm276, %v1082, %v1084
    %v1086 = vrot.slane %v960, 3
    %v1087 = vsel %vm276, %v1084, %v1086
    %v1088 = vrot.slane %v961, 3
    %v1089 = vsel %vm276, %v1086, %v1088
    %v1090 = vrot.slane %v962, 3
    %v1091 = vsel %vm276, %v1088, %v1090
    %v1092 = vrot.slane %v963, 3
    %v1093 = vsel %vm276, %v1090, %v1092
    %v1094 = vrot.slane %v964, 3
    %v1095 = vsel %vm276, %v1092, %v1094
    %v1096 = vrot.slane %v965, 3
    %v1097 = vsel %vm276, %v1094, %v1096
    %v1098 = vrot.slane %v966, 3
    %v1099 = vsel %vm276, %v1096, %v1098
    %v1100 = vrot.slane %v970, 3
    %v1101 = vsel %vm276, %v1098, %v1100
    %v1102 = vadd.s32 %v1053, %v1071
    %v1103 = vadd.s32 %v1054, %v1073
    %v1104 = vadd.s32 %v1055, %v1075
    %v1105 = vadd.s32 %v1056, %v1077
    %v1106 = vadd.s32 %v1057, %v1079
    %v1107 = vadd.s32 %v1058, %v1081
    %v1108 = vadd.s32 %v1059, %v1083
    %v1109 = vadd.s32 %v1060, %v1085
    %v1110 = vadd.s32 %v1061, %v1087
    %v1111 = vadd.s32 %v1062, %v1089
    %v1112 = vadd.s32 %v1063, %v1091
    %v1113 = vadd.s32 %v1064, %v1093
    %v1114 = vadd.s32 %v1065, %v1095
    %v1115 = vadd.s32 %v1066, %v1097
    %v1116 = vadd.s32 %v1067, %v1099
    %v1117 = vadd.s32 %v1068, %v1101
    %1118 = vrot.lane.b32.xlu0 %v1102, 1
    %v1119 = vpop.permute.xlu0 %1118
    %1120 = vrot.lane.b32.xlu0 %v1103, 1
    %v1121 = vpop.permute.xlu0 %1120
    %1122 = vrot.lane.b32.xlu0 %v1104, 1
    %v1123 = vpop.permute.xlu0 %1122
    %1124 = vrot.lane.b32.xlu0 %v1105, 1
    %v1125 = vpop.permute.xlu0 %1124
    %1126 = vrot.lane.b32.xlu0 %v1106, 1
    %v1127 = vpop.permute.xlu0 %1126
    %1128 = vrot.lane.b32.xlu0 %v1107, 1
    %v1129 = vpop.permute.xlu0 %1128
    %1130 = vrot.lane.b32.xlu0 %v1108, 1
    %v1131 = vpop.permute.xlu0 %1130
    %1132 = vrot.lane.b32.xlu0 %v1109, 1
    %v1133 = vpop.permute.xlu0 %1132
    %1134 = vrot.lane.b32.xlu0 %v1110, 1
    %v1135 = vpop.permute.xlu0 %1134
    %1136 = vrot.lane.b32.xlu0 %v1111, 1
    %v1137 = vpop.permute.xlu0 %1136
    %1138 = vrot.lane.b32.xlu0 %v1112, 1
    %v1139 = vpop.permute.xlu0 %1138
    %1140 = vrot.lane.b32.xlu0 %v1113, 1
    %v1141 = vpop.permute.xlu0 %1140
    %1142 = vrot.lane.b32.xlu0 %v1114, 1
    %v1143 = vpop.permute.xlu0 %1142
    %1144 = vrot.lane.b32.xlu0 %v1115, 1
    %v1145 = vpop.permute.xlu0 %1144
    %1146 = vrot.lane.b32.xlu0 %v1116, 1
    %v1147 = vpop.permute.xlu0 %1146
    %1148 = vrot.lane.b32.xlu0 %v1117, 1
    %v1149 = vpop.permute.xlu0 %1148
    %v1150 = vsub.s32 %v1102, %v1119
    %v1151 = vsub.s32 %v1103, %v1121
    %v1152 = vsub.s32 %v1104, %v1123
    %v1153 = vsub.s32 %v1105, %v1125
    %v1154 = vsub.s32 %v1106, %v1127
    %v1155 = vsub.s32 %v1107, %v1129
    %v1156 = vsub.s32 %v1108, %v1131
    %v1157 = vsub.s32 %v1109, %v1133
    %v1158 = vsub.s32 %v1110, %v1135
    %v1159 = vsub.s32 %v1111, %v1137
    %v1160 = vsub.s32 %v1112, %v1139
    %v1161 = vsub.s32 %v1113, %v1141
    %v1162 = vsub.s32 %v1114, %v1143
    %v1163 = vsub.s32 %v1115, %v1145
    %v1164 = vsub.s32 %v1116, %v1147
    %v1165 = vsub.s32 %v1117, %v1149
    %vm1166 = vcmp.gt.s32.totalorder %v1150, 0
    %vm1167 = vcmp.gt.s32.totalorder %v1151, 0
    %vm1168 = vcmp.gt.s32.totalorder %v1152, 0
    %vm1169 = vcmp.gt.s32.totalorder %v1153, 0
    %vm1170 = vcmp.gt.s32.totalorder %v1154, 0
    %vm1171 = vcmp.gt.s32.totalorder %v1155, 0
    %vm1172 = vcmp.gt.s32.totalorder %v1156, 0
    %vm1173 = vcmp.gt.s32.totalorder %v1157, 0
    %vm1174 = vcmp.gt.s32.totalorder %v1158, 0
    %vm1175 = vcmp.gt.s32.totalorder %v1159, 0
    %vm1176 = vcmp.gt.s32.totalorder %v1160, 0
    %vm1177 = vcmp.gt.s32.totalorder %v1161, 0
    %vm1178 = vcmp.gt.s32.totalorder %v1162, 0
    %vm1179 = vcmp.gt.s32.totalorder %v1163, 0
    %vm1180 = vcmp.gt.s32.totalorder %v1164, 0
    %vm1181 = vcmp.gt.s32.totalorder %v1165, 0
    %1182 = vrot.lane.b32.xlu0 %v1102, 127
    %v1183 = vpop.permute.xlu0 %1182
    %1184 = vrot.lane.b32.xlu0 %v1103, 127
    %v1185 = vpop.permute.xlu0 %1184
    %1186 = vrot.lane.b32.xlu0 %v1104, 127
    %v1187 = vpop.permute.xlu0 %1186
    %1188 = vrot.lane.b32.xlu0 %v1105, 127
    %v1189 = vpop.permute.xlu0 %1188
    %1190 = vrot.lane.b32.xlu0 %v1106, 127
    %v1191 = vpop.permute.xlu0 %1190
    %1192 = vrot.lane.b32.xlu0 %v1107, 127
    %v1193 = vpop.permute.xlu0 %1192
    %1194 = vrot.lane.b32.xlu0 %v1108, 127
    %v1195 = vpop.permute.xlu0 %1194
    %1196 = vrot.lane.b32.xlu0 %v1109, 127
    %v1197 = vpop.permute.xlu0 %1196
    %1198 = vrot.lane.b32.xlu0 %v1110, 127
    %v1199 = vpop.permute.xlu0 %1198
    %1200 = vrot.lane.b32.xlu0 %v1111, 127
    %v1201 = vpop.permute.xlu0 %1200
    %1202 = vrot.lane.b32.xlu0 %v1112, 127
    %v1203 = vpop.permute.xlu0 %1202
    %1204 = vrot.lane.b32.xlu0 %v1113, 127
    %v1205 = vpop.permute.xlu0 %1204
    %1206 = vrot.lane.b32.xlu0 %v1114, 127
    %v1207 = vpop.permute.xlu0 %1206
    %1208 = vrot.lane.b32.xlu0 %v1115, 127
    %v1209 = vpop.permute.xlu0 %1208
    %1210 = vrot.lane.b32.xlu0 %v1116, 127
    %v1211 = vpop.permute.xlu0 %1210
    %1212 = vrot.lane.b32.xlu0 %v1117, 127
    %v1213 = vpop.permute.xlu0 %1212
    %v1214 = vsub.s32 %v1102, %v1183
    %v1215 = vsub.s32 %v1103, %v1185
    %v1216 = vsub.s32 %v1104, %v1187
    %v1217 = vsub.s32 %v1105, %v1189
    %v1218 = vsub.s32 %v1106, %v1191
    %v1219 = vsub.s32 %v1107, %v1193
    %v1220 = vsub.s32 %v1108, %v1195
    %v1221 = vsub.s32 %v1109, %v1197
    %v1222 = vsub.s32 %v1110, %v1199
    %v1223 = vsub.s32 %v1111, %v1201
    %v1224 = vsub.s32 %v1112, %v1203
    %v1225 = vsub.s32 %v1113, %v1205
    %v1226 = vsub.s32 %v1114, %v1207
    %v1227 = vsub.s32 %v1115, %v1209
    %v1228 = vsub.s32 %v1116, %v1211
    %v1229 = vsub.s32 %v1117, %v1213
    %vm1230 = vcmp.gt.s32.totalorder %v1214, 0
    %vm1231 = vcmp.gt.s32.totalorder %v1215, 0
    %vm1232 = vcmp.gt.s32.totalorder %v1216, 0
    %vm1233 = vcmp.gt.s32.totalorder %v1217, 0
    %vm1234 = vcmp.gt.s32.totalorder %v1218, 0
    %vm1235 = vcmp.gt.s32.totalorder %v1219, 0
    %vm1236 = vcmp.gt.s32.totalorder %v1220, 0
    %vm1237 = vcmp.gt.s32.totalorder %v1221, 0
    %vm1238 = vcmp.gt.s32.totalorder %v1222, 0
    %vm1239 = vcmp.gt.s32.totalorder %v1223, 0
    %vm1240 = vcmp.gt.s32.totalorder %v1224, 0
    %vm1241 = vcmp.gt.s32.totalorder %v1225, 0
    %vm1242 = vcmp.gt.s32.totalorder %v1226, 0
    %vm1243 = vcmp.gt.s32.totalorder %v1227, 0
    %vm1244 = vcmp.gt.s32.totalorder %v1228, 0
    %vm1245 = vcmp.gt.s32.totalorder %v1229, 0
    %vm1246 = vmxor %vm1166, %vm1230
    %vm1247 = vmxor %vm1167, %vm1231
    %vm1248 = vmxor %vm1168, %vm1232
    %vm1249 = vmxor %vm1169, %vm1233
    %vm1250 = vmxor %vm1170, %vm1234
    %vm1251 = vmxor %vm1171, %vm1235
    %vm1252 = vmxor %vm1172, %vm1236
    %vm1253 = vmxor %vm1173, %vm1237
    %vm1254 = vmxor %vm1174, %vm1238
    %vm1255 = vmxor %vm1175, %vm1239
    %vm1256 = vmxor %vm1176, %vm1240
    %vm1257 = vmxor %vm1177, %vm1241
    %vm1258 = vmxor %vm1178, %vm1242
    %vm1259 = vmxor %vm1179, %vm1243
    %vm1260 = vmxor %vm1180, %vm1244
    %vm1261 = vmxor %vm1181, %vm1245
    %vm1262 = vmand %vm1166, %vm1230
    %vm1263 = vmand %vm1167, %vm1231
    %vm1264 = vmand %vm1168, %vm1232
    %vm1265 = vmand %vm1169, %vm1233
    %vm1266 = vmand %vm1170, %vm1234
    %vm1267 = vmand %vm1171, %vm1235
    %vm1268 = vmand %vm1172, %vm1236
    %vm1269 = vmand %vm1173, %vm1237
    %vm1270 = vmand %vm1174, %vm1238
    %vm1271 = vmand %vm1175, %vm1239
    %vm1272 = vmand %vm1176, %vm1240
    %vm1273 = vmand %vm1177, %vm1241
    %vm1274 = vmand %vm1178, %vm1242
    %vm1275 = vmand %vm1179, %vm1243
    %vm1276 = vmand %vm1180, %vm1244
    %vm1277 = vmand %vm1181, %vm1245
    %v1278 = vsel %vm1262, 254, 0
    %v1279 = vsel %vm1263, 254, 0
    %v1280 = vsel %vm1264, 254, 0
    %v1281 = vsel %vm1265, 254, 0
    %v1282 = vsel %vm1266, 254, 0
    %v1283 = vsel %vm1267, 254, 0
    %v1284 = vsel %vm1268, 254, 0
    %v1285 = vsel %vm1269, 254, 0
    %v1286 = vsel %vm1270, 254, 0
    %v1287 = vsel %vm1271, 254, 0
    %v1288 = vsel %vm1272, 254, 0
    %v1289 = vsel %vm1273, 254, 0
    %v1290 = vsel %vm1274, 254, 0
    %v1291 = vsel %vm1275, 254, 0
    %v1292 = vsel %vm1276, 254, 0
    %v1293 = vsel %vm1277, 254, 0
    %v1294 = vsel %vm1246, 255, %v1278
    %v1295 = vsel %vm1247, 255, %v1279
    %v1296 = vsel %vm1248, 255, %v1280
    %v1297 = vsel %vm1249, 255, %v1281
    %v1298 = vsel %vm1250, 255, %v1282
    %v1299 = vsel %vm1251, 255, %v1283
    %v1300 = vsel %vm1252, 255, %v1284
    %v1301 = vsel %vm1253, 255, %v1285
    %v1302 = vsel %vm1254, 255, %v1286
    %v1303 = vsel %vm1255, 255, %v1287
    %v1304 = vsel %vm1256, 255, %v1288
    %v1305 = vsel %vm1257, 255, %v1289
    %v1306 = vsel %vm1258, 255, %v1290
    %v1307 = vsel %vm1259, 255, %v1291
    %v1308 = vsel %vm1260, 255, %v1292
    %v1309 = vsel %vm1261, 255, %v1293
    %vm1310 = vcmp.gt.s32.totalorder %v899, %v1294
    %v1311 = vsel %vm1310, %v899, %v1294
    %vm1312 = vcmp.gt.s32.totalorder %v901, %v1295
    %v1313 = vsel %vm1312, %v901, %v1295
    %vm1314 = vcmp.gt.s32.totalorder %v903, %v1296
    %v1315 = vsel %vm1314, %v903, %v1296
    %vm1316 = vcmp.gt.s32.totalorder %v905, %v1297
    %v1317 = vsel %vm1316, %v905, %v1297
    %vm1318 = vcmp.gt.s32.totalorder %v907, %v1298
    %v1319 = vsel %vm1318, %v907, %v1298
    %vm1320 = vcmp.gt.s32.totalorder %v909, %v1299
    %v1321 = vsel %vm1320, %v909, %v1299
    %vm1322 = vcmp.gt.s32.totalorder %v911, %v1300
    %v1323 = vsel %vm1322, %v911, %v1300
    %vm1324 = vcmp.gt.s32.totalorder %v913, %v1301
    %v1325 = vsel %vm1324, %v913, %v1301
    %vm1326 = vcmp.gt.s32.totalorder %v915, %v1302
    %v1327 = vsel %vm1326, %v915, %v1302
    %vm1328 = vcmp.gt.s32.totalorder %v917, %v1303
    %v1329 = vsel %vm1328, %v917, %v1303
    %vm1330 = vcmp.gt.s32.totalorder %v919, %v1304
    %v1331 = vsel %vm1330, %v919, %v1304
    %vm1332 = vcmp.gt.s32.totalorder %v921, %v1305
    %v1333 = vsel %vm1332, %v921, %v1305
    %vm1334 = vcmp.gt.s32.totalorder %v923, %v1306
    %v1335 = vsel %vm1334, %v923, %v1306
    %vm1336 = vcmp.gt.s32.totalorder %v925, %v1307
    %v1337 = vsel %vm1336, %v925, %v1307
    %vm1338 = vcmp.gt.s32.totalorder %v927, %v1308
    %v1339 = vsel %vm1338, %v927, %v1308
    %vm1340 = vcmp.gt.s32.totalorder %v929, %v1309
    %v1341 = vsel %vm1340, %v929, %v1309
    %v1342 = vpack.c.b16 %v1311, %v1311
    %v1343 = vpack.c.b8 %v1342, %v1342
    %v1344 = vpack.c.b16 %v1313, %v1313
    %v1345 = vpack.c.b8 %v1344, %v1344
    %v1346 = vpack.c.b16 %v1315, %v1315
    %v1347 = vpack.c.b8 %v1346, %v1346
    %v1348 = vpack.c.b16 %v1317, %v1317
    %v1349 = vpack.c.b8 %v1348, %v1348
    %v1350 = vpack.c.b16 %v1319, %v1319
    %v1351 = vpack.c.b8 %v1350, %v1350
    %v1352 = vpack.c.b16 %v1321, %v1321
    %v1353 = vpack.c.b8 %v1352, %v1352
    %v1354 = vpack.c.b16 %v1323, %v1323
    %v1355 = vpack.c.b8 %v1354, %v1354
    %v1356 = vpack.c.b16 %v1325, %v1325
    %v1357 = vpack.c.b8 %v1356, %v1356
    %v1358 = vpack.c.b16 %v1327, %v1327
    %v1359 = vpack.c.b8 %v1358, %v1358
    %v1360 = vpack.c.b16 %v1329, %v1329
    %v1361 = vpack.c.b8 %v1360, %v1360
    %v1362 = vpack.c.b16 %v1331, %v1331
    %v1363 = vpack.c.b8 %v1362, %v1362
    %v1364 = vpack.c.b16 %v1333, %v1333
    %v1365 = vpack.c.b8 %v1364, %v1364
    %v1366 = vpack.c.b16 %v1335, %v1335
    %v1367 = vpack.c.b8 %v1366, %v1366
    %v1368 = vpack.c.b16 %v1337, %v1337
    %v1369 = vpack.c.b8 %v1368, %v1368
    %v1370 = vpack.c.b16 %v1339, %v1339
    %v1371 = vpack.c.b8 %v1370, %v1370
    %v1372 = vpack.c.b16 %v1341, %v1341
    %v1373 = vpack.c.b8 %v1372, %v1372
    %1374 = vrot.lane.b32.xlu0 %v1343, 127
    %v1375 = vpop.permute.xlu0 %1374
    %1376 = vrot.lane.b32.xlu0 %v1345, 127
    %v1377 = vpop.permute.xlu0 %1376
    %1378 = vrot.lane.b32.xlu0 %v1347, 127
    %v1379 = vpop.permute.xlu0 %1378
    %1380 = vrot.lane.b32.xlu0 %v1349, 127
    %v1381 = vpop.permute.xlu0 %1380
    %1382 = vrot.lane.b32.xlu0 %v1351, 127
    %v1383 = vpop.permute.xlu0 %1382
    %1384 = vrot.lane.b32.xlu0 %v1353, 127
    %v1385 = vpop.permute.xlu0 %1384
    %1386 = vrot.lane.b32.xlu0 %v1355, 127
    %v1387 = vpop.permute.xlu0 %1386
    %1388 = vrot.lane.b32.xlu0 %v1357, 127
    %v1389 = vpop.permute.xlu0 %1388
    %1390 = vrot.lane.b32.xlu0 %v1359, 127
    %v1391 = vpop.permute.xlu0 %1390
    %1392 = vrot.lane.b32.xlu0 %v1361, 127
    %v1393 = vpop.permute.xlu0 %1392
    %1394 = vrot.lane.b32.xlu0 %v1363, 127
    %v1395 = vpop.permute.xlu0 %1394
    %1396 = vrot.lane.b32.xlu0 %v1365, 127
    %v1397 = vpop.permute.xlu0 %1396
    %1398 = vrot.lane.b32.xlu0 %v1367, 127
    %v1399 = vpop.permute.xlu0 %1398
    %1400 = vrot.lane.b32.xlu0 %v1369, 127
    %v1401 = vpop.permute.xlu0 %1400
    %1402 = vrot.lane.b32.xlu0 %v1371, 127
    %v1403 = vpop.permute.xlu0 %1402
    %1404 = vrot.lane.b32.xlu0 %v1373, 127
    %v1405 = vpop.permute.xlu0 %1404
    %vm1406 = vcmask 123904
    %1407 = vst.msk [vmem:[%s2] sm:$0x3] %vm1406, %v1375
    %1408 = vst.msk [vmem:[%s2 + $0x2] sm:$0x3] %vm1406, %v1377
    %1409 = vst.msk [vmem:[%s2 + $0x4] sm:$0x3] %vm1406, %v1379
    %1410 = vst.msk [vmem:[%s2 + $0x6] sm:$0x3] %vm1406, %v1381
    %1411 = vst.msk [vmem:[%s2 + $0x8] sm:$0x3] %vm1406, %v1383
    %1412 = vst.msk [vmem:[%s2 + $0xa] sm:$0x3] %vm1406, %v1385
    %1413 = vst.msk [vmem:[%s2 + $0xc] sm:$0x3] %vm1406, %v1387
    %1414 = vst.msk [vmem:[%s2 + $0xe] sm:$0x3] %vm1406, %v1389
    %1415 = vst.msk [vmem:[%s2 + $0x10] sm:$0x3] %vm1406, %v1391
    %1416 = vst.msk [vmem:[%s2 + $0x12] sm:$0x3] %vm1406, %v1393
    %1417 = vst.msk [vmem:[%s2 + $0x14] sm:$0x3] %vm1406, %v1395
    %1418 = vst.msk [vmem:[%s2 + $0x16] sm:$0x3] %vm1406, %v1397
    %1419 = vst.msk [vmem:[%s2 + $0x18] sm:$0x3] %vm1406, %v1399
    %1420 = vst.msk [vmem:[%s2 + $0x1a] sm:$0x3] %vm1406, %v1401
    %1421 = vst.msk [vmem:[%s2 + $0x1c] sm:$0x3] %vm1406, %v1403
    %1422 = vst.msk [vmem:[%s2 + $0x1e] sm:$0x3] %vm1406, %v1405
    // Predicated region
    $region86: #{diagonal_noise.1} parent=1 // pred_check
      _
    $region87: #{diagonal_noise.1} parent=1 // pred_check_branch
      %1424 = sbr.rel (0) target = $region89
    $region88: #{diagonal_noise.1} parent=1 // pred_region
      _
    $region89: #{diagonal_noise.1} parent=1 // pred_fallthru
      _
    // Predicated region
    $region90: #{diagonal_noise.1} parent=1 // pred_check
      _
    $region91: #{diagonal_noise.1} parent=1 // pred_check_branch
      %1426 = sbr.rel (0) target = $region93
    $region92: #{diagonal_noise.1} parent=1 // pred_region
      _
    $region93: #{diagonal_noise.1} parent=1 // pred_fallthru
      _

</llo_original>
